<compile_context>
chip_gen: v7x
topology: tpu7x:2x2x1
jax: 0.10.0
libtpu: 0.0.40
codegen_flags: <defaults>
</compile_context>

<pallas_src>
import numpy as np
import jax
import jax.numpy as jnp
from jax.experimental import pallas as pl
from jax.experimental.pallas import tpu as pltpu

_BN_EPS = 1e-5
_PREC = jax.lax.Precision.HIGHEST   # used only in the pure-JAX f32 reference


# ---------------------- parameter init (matches the PyTorch module) ---------------------- #

def init_generator_params(key, noise_dim, label_dim, hid_dim):
    concat_dim = noise_dim + label_dim
    cfgs = [
        dict(cin=concat_dim, cout=hid_dim * 4, k=3, s=2, final=False),   # upconv1
        dict(cin=hid_dim * 4, cout=hid_dim * 2, k=4, s=1, final=False),  # upconv2
        dict(cin=hid_dim * 2, cout=hid_dim, k=3, s=2, final=False),      # upconv3
        dict(cin=hid_dim, cout=1, k=4, s=2, final=True),                 # upconv4
    ]
    params = []
    for cfg in cfgs:
        key, kw_, kb_, kg_, kbe_ = jax.random.split(key, 5)
        # PyTorch ConvTranspose2d weight layout: (Cin, Cout, KH, KW)
        w = 0.1 * jax.random.normal(kw_, (cfg['cin'], cfg['cout'], cfg['k'], cfg['k']),
                                    jnp.float32)
        b = 0.1 * jax.random.normal(kb_, (cfg['cout'],), jnp.float32)
        p = dict(cfg, w=w, b=b)
        if not cfg['final']:
            p['gamma'] = 1.0 + 0.1 * jax.random.normal(kg_, (cfg['cout'],), jnp.float32)
            p['beta'] = 0.1 * jax.random.normal(kbe_, (cfg['cout'],), jnp.float32)
        params.append(p)
    return params


# ----------------- static operator construction (hoisted, done once at init) -------------- #

def prepare_generator_params(params, batch):
    """Precompute the per-layer fused operators used by the kernel (once per config)."""
    prepared = []
    h, w = 1, 1
    for p in params:
        cin, cout, ksz, s = p['cin'], p['cout'], p['k'], p['s']
        h_in, w_in = h, w
        h_out = (h_in - 1) * s + ksz
        w_out = (w_in - 1) * s + ksz
        cw = cout * w_out

        wt = np.asarray(p['w'], np.float32)                      # (cin, cout, ksz, ksz)

        # Width scatter RW[kw, iw, ow] = [ow == iw*s + kw]  (0/1, exact in bf16).
        rw = np.zeros((ksz, w_in, w_out), np.float32)
        for kw in range(ksz):
            for iw in range(w_in):
                rw[kw, iw, iw * s + kw] = 1.0
        # Fused channel-mix + width-scatter operator (one bf16 MXU matmul per layer):
        #   M[(c*W_in+iw), ((kh*Cout+d)*W_out+ow)] = sum_kw w[c,d,kh,kw] * RW[kw,iw,ow]
        # Each entry is a single tap weight (no sums), so bf16 only rounds the taps.
        m = np.einsum('cduv,vio->ciudo', wt, rw).reshape(cin * w_in, ksz * cw)

        # Height scatter (0/1, exact in bf16), block-diagonal over the batch:
        #   P[kh, b*H_out + ih*s + kh, b*H_in + ih] = 1
        pm = np.zeros((ksz, batch * h_out, batch * h_in), np.float32)
        for kh in range(ksz):
            for b_i in range(batch):
                for ih in range(h_in):
                    pm[kh, b_i * h_out + ih * s + kh, b_i * h_in + ih] = 1.0

        layer = dict(k=ksz, cout=cout, h_out=h_out, w_out=w_out, final=p['final'],
                     m=jnp.asarray(m, jnp.bfloat16),
                     p=jnp.asarray(pm, jnp.bfloat16))
        if p['final']:
            layer['bias_w'] = jnp.asarray(
                np.repeat(np.asarray(p['b'], np.float32), w_out)[None], jnp.float32)
        else:
            # Block-ones "pool+broadcast" operator: pb[(d,ow),(d',ow')] = [d == d'].
            # One matmul gives the per-channel sum already broadcast over (ow).
            pb = np.kron(np.eye(cout, dtype=np.float32),
                         np.ones((w_out, w_out), np.float32))    # (cw, cw), 0/1
            layer['pb'] = jnp.asarray(pb, jnp.bfloat16)
            # Static BN affine, pre-broadcast offline (perf-review item 4).
            layer['gamma_w'] = jnp.asarray(
                np.repeat(np.asarray(p['gamma'], np.float32), w_out)[None], jnp.float32)
            layer['beta_w'] = jnp.asarray(
                np.repeat(np.asarray(p['beta'], np.float32), w_out)[None], jnp.float32)
        prepared.append(layer)
        h, w = h_out, w_out
    return prepared


# --------------------------------- fused Pallas kernel ----------------------------------- #

def _make_generator_kernel(meta, batch):
    """meta: static tuple of (ksz, cout, h_out, w_out, final) per layer."""

    def kernel(*refs):
        o_ref = refs[-1]
        x = refs[0][...].astype(jnp.float32)          # (B*H, C*W): rows=(b,h), lanes=(c,w)
        i = 1
        for (ksz, cout, h_out, w_out, final) in meta:
            cw = cout * w_out
            if final:
                m_ref, p_ref, bias_ref = refs[i:i + 3]
                i += 3
            else:
                m_ref, p_ref, pb_ref, gw_ref, bw_ref = refs[i:i + 5]
                i += 5

            # (a) channel-mix + kw-taps + width-scatter: one bf16 matmul, f32 accumulate.
            z = jnp.dot(x.astype(jnp.bfloat16), m_ref[...],
                        preferred_element_type=jnp.float32)      # (B*H_in, ksz*cout*W_out)

            # (b) height-scatter: ksz tiny 0/1 matmuls accumulated in f32.
            y = None
            for kh in range(ksz):
                zk = z[:, kh * cw:(kh + 1) * cw].astype(jnp.bfloat16)
                yk = jnp.dot(p_ref[kh], zk,
                             preferred_element_type=jnp.float32)  # (B*H_out, cout*W_out)
                y = yk if y is None else y + yk

            if not final:
                # BatchNorm (training batch stats) + ReLU, conv bias dropped (exact).
                inv_n = 1.0 / float(batch * h_out * w_out)
                col_sum = jnp.sum(y, axis=0, keepdims=True)               # (1, cw)
                mean_w = jnp.dot(col_sum.astype(jnp.bfloat16), pb_ref[...],
                                 preferred_element_type=jnp.float32) * inv_n
                yc = y - mean_w
                sq_sum = jnp.sum(yc * yc, axis=0, keepdims=True)          # (1, cw)
                var_w = jnp.dot(sq_sum.astype(jnp.bfloat16), pb_ref[...],
                                preferred_element_type=jnp.float32) * inv_n
                scale_w = gw_ref[...] * jax.lax.rsqrt(var_w + _BN_EPS)    # rsqrt -> EUP
                x = jnp.maximum(yc * scale_w + bw_ref[...], 0.0)          # BN + ReLU
            else:
                o_ref[...] = jnp.tanh(y + bias_ref[...])                  # (B*28, 28)

    return kernel


def generator_pallas(noise, label, prepared):
    B = label.shape[0]
    # Input spatial is 1x1, so the concat already matches the (B*H, C*W) layout.
    x = jnp.concatenate([noise, label], axis=1).astype(jnp.float32)
    meta = tuple((p['k'], p['cout'], p['h_out'], p['w_out'], p['final']) for p in prepared)
    inputs = [x]
    for p in prepared:
        if p['final']:
            inputs += [p['m'], p['p'], p['bias_w']]
        else:
            inputs += [p['m'], p['p'], p['pb'], p['gamma_w'], p['beta_w']]
    last = prepared[-1]
    vmem = pl.BlockSpec(memory_space=pltpu.MemorySpace.VMEM)
    out = pl.pallas_call(
        _make_generator_kernel(meta, B),
        out_shape=jax.ShapeDtypeStruct((B * last['h_out'], last['cout'] * last['w_out']),
                                       jnp.float32),
        in_specs=[vmem] * len(inputs),
        out_specs=vmem,
    )(*inputs)
    # rows=(b, oh), lanes=(d, ow)  ->  NCHW; pure wrapper-level reshape/transpose (~1.5 K elems)
    return out.reshape(B, last['h_out'], last['cout'], last['w_out']).transpose(0, 2, 1, 3)


# ---------------------------------- pure-JAX f32 reference -------------------------------- #

def _convt_ref(x, w, b, stride):
    B, Cin, H, W = x.shape
    _, Cout, KH, KW = w.shape
    Ho = (H - 1) * stride + KH
    Wo = (W - 1) * stride + KW
    out = jnp.zeros((B, Cout, Ho, Wo), jnp.float32)
    for kh in range(KH):
        for kw in range(KW):
            contrib = jnp.einsum('bchw,cd->bdhw', x, w[:, :, kh, kw], precision=_PREC)
            out = out.at[:, :, kh:kh + (H - 1) * stride + 1:stride,
                         kw:kw + (W - 1) * stride + 1:stride].add(contrib)
    return out + b[None, :, None, None]


def generator_ref(noise, label, params):
    B = label.shape[0]
    x = jnp.concatenate([noise, label], axis=1).reshape(B, -1, 1, 1).astype(jnp.float32)
    for p in params:
        x = _convt_ref(x, p['w'], p['b'], p['s'])
        if p['final']:
            x = jnp.tanh(x)
        else:
            mean = jnp.mean(x, axis=(0, 2, 3), keepdims=True)
            var = jnp.mean((x - mean) ** 2, axis=(0, 2, 3), keepdims=True)
            xh = (x - mean) * jax.lax.rsqrt(var + _BN_EPS)
            x = xh * p['gamma'][None, :, None, None] + p['beta'][None, :, None, None]
            x = jnp.maximum(x, 0.0)
    return x


# ------------------------------------------ main ------------------------------------------ #

if __name__ == "__main__":
    key = jax.random.PRNGKey(0)
    B, noise_dim, label_dim, hid_dim = 2, 16, 4, 8   # small shapes consistent with module
    k_noise, k_label, k_params = jax.random.split(key, 3)
    noise = jax.random.normal(k_noise, (B, noise_dim), jnp.float32)
    label = jax.random.normal(k_label, (B, label_dim), jnp.float32)

    params = init_generator_params(k_params, noise_dim, label_dim, hid_dim)
    prepared = prepare_generator_params(params, B)   # hoisted: built once, not per forward

    out = generator_pallas(noise, label, prepared)
    out = jax.block_until_ready(out)
    assert out.shape == (B, 1, 28, 28), out.shape

    ref = jax.block_until_ready(generator_ref(noise, label, params))
    # bf16 MXU operands (per perf review) -> compare against the f32 reference with a
    # bf16-appropriate tolerance.
    if not jnp.allclose(out, ref, atol=2e-2, rtol=2e-2):
        max_err = float(jnp.max(jnp.abs(out - ref)))
        raise AssertionError(f"mismatch vs reference, max abs err = {max_err}")
    print("KERNEL_OK")
</pallas_src>

<mosaic_0001>
module attributes {stable_mosaic.version = 11 : i64} {
  func.func @kernel(%arg0: memref<2x20xf32, #tpu.memory_space<vmem>>, %arg1: memref<20x288xbf16, #tpu.memory_space<vmem>>, %arg2: memref<3x6x2xbf16, #tpu.memory_space<vmem>>, %arg3: memref<96x96xbf16, #tpu.memory_space<vmem>>, %arg4: memref<1x96xf32, #tpu.memory_space<vmem>>, %arg5: memref<1x96xf32, #tpu.memory_space<vmem>>, %arg6: memref<96x384xbf16, #tpu.memory_space<vmem>>, %arg7: memref<4x12x6xbf16, #tpu.memory_space<vmem>>, %arg8: memref<96x96xbf16, #tpu.memory_space<vmem>>, %arg9: memref<1x96xf32, #tpu.memory_space<vmem>>, %arg10: memref<1x96xf32, #tpu.memory_space<vmem>>, %arg11: memref<96x312xbf16, #tpu.memory_space<vmem>>, %arg12: memref<3x26x12xbf16, #tpu.memory_space<vmem>>, %arg13: memref<104x104xbf16, #tpu.memory_space<vmem>>, %arg14: memref<1x104xf32, #tpu.memory_space<vmem>>, %arg15: memref<1x104xf32, #tpu.memory_space<vmem>>, %arg16: memref<104x112xbf16, #tpu.memory_space<vmem>>, %arg17: memref<4x56x26xbf16, #tpu.memory_space<vmem>>, %arg18: memref<1x28xf32, #tpu.memory_space<vmem>>, %arg19: memref<56x28xf32, #tpu.memory_space<vmem>>) attributes {dimension_semantics = [], scalar_prefetch = 0 : i64, scratch_operands = 0 : i64, tpu.core_type = #tpu.core_type<tc>} {
    %c0 = arith.constant 0 : index
    %c0_0 = arith.constant 0 : index
    %0 = vector.load %arg0[%c0, %c0_0] : memref<2x20xf32, #tpu.memory_space<vmem>>, vector<2x20xf32>
    %1 = arith.truncf %0 : vector<2x20xf32> to vector<2x20xbf16>
    %c0_1 = arith.constant 0 : index
    %c0_2 = arith.constant 0 : index
    %2 = vector.load %arg1[%c0_1, %c0_2] : memref<20x288xbf16, #tpu.memory_space<vmem>>, vector<20x288xbf16>
    %cst = arith.constant dense<0.000000e+00> : vector<2x288xf32>
    %3 = tpu.matmul %1, %2, %cst {dimension_numbers = #tpu.dot_dimension_numbers<[1], [0], [0], [1], [0, 0, 1, 1], [], []>} : vector<2x20xbf16>, vector<20x288xbf16>, vector<2x288xf32> -> vector<2x288xf32>
    %4 = vector.extract_strided_slice %3 {offsets = [0, 0], sizes = [2, 96], strides = [1, 1]} : vector<2x288xf32> to vector<2x96xf32>
    %5 = arith.truncf %4 : vector<2x96xf32> to vector<2x96xbf16>
    %c0_3 = arith.constant 0 : index
    %c0_4 = arith.constant 0 : index
    %c0_5 = arith.constant 0 : index
    %6 = vector.load %arg2[%c0_3, %c0_4, %c0_5] : memref<3x6x2xbf16, #tpu.memory_space<vmem>>, vector<1x6x2xbf16>
    %7 = vector.shape_cast %6 : vector<1x6x2xbf16> to vector<6x2xbf16>
    %cst_6 = arith.constant dense<0.000000e+00> : vector<6x96xf32>
    %8 = tpu.matmul %7, %5, %cst_6 {dimension_numbers = #tpu.dot_dimension_numbers<[1], [0], [0], [1], [0, 0, 1, 1], [], []>} : vector<6x2xbf16>, vector<2x96xbf16>, vector<6x96xf32> -> vector<6x96xf32>
    %9 = vector.extract_strided_slice %3 {offsets = [0, 96], sizes = [2, 96], strides = [1, 1]} : vector<2x288xf32> to vector<2x96xf32>
    %10 = arith.truncf %9 : vector<2x96xf32> to vector<2x96xbf16>
    %c1 = arith.constant 1 : index
    %c0_7 = arith.constant 0 : index
    %c0_8 = arith.constant 0 : index
    %11 = vector.load %arg2[%c1, %c0_7, %c0_8] : memref<3x6x2xbf16, #tpu.memory_space<vmem>>, vector<1x6x2xbf16>
    %12 = vector.shape_cast %11 : vector<1x6x2xbf16> to vector<6x2xbf16>
    %cst_9 = arith.constant dense<0.000000e+00> : vector<6x96xf32>
    %13 = tpu.matmul %12, %10, %cst_9 {dimension_numbers = #tpu.dot_dimension_numbers<[1], [0], [0], [1], [0, 0, 1, 1], [], []>} : vector<6x2xbf16>, vector<2x96xbf16>, vector<6x96xf32> -> vector<6x96xf32>
    %14 = arith.addf %8, %13 : vector<6x96xf32>
    %15 = vector.extract_strided_slice %3 {offsets = [0, 192], sizes = [2, 96], strides = [1, 1]} : vector<2x288xf32> to vector<2x96xf32>
    %16 = arith.truncf %15 : vector<2x96xf32> to vector<2x96xbf16>
    %c2 = arith.constant 2 : index
    %c0_10 = arith.constant 0 : index
    %c0_11 = arith.constant 0 : index
    %17 = vector.load %arg2[%c2, %c0_10, %c0_11] : memref<3x6x2xbf16, #tpu.memory_space<vmem>>, vector<1x6x2xbf16>
    %18 = vector.shape_cast %17 : vector<1x6x2xbf16> to vector<6x2xbf16>
    %cst_12 = arith.constant dense<0.000000e+00> : vector<6x96xf32>
    %19 = tpu.matmul %18, %16, %cst_12 {dimension_numbers = #tpu.dot_dimension_numbers<[1], [0], [0], [1], [0, 0, 1, 1], [], []>} : vector<6x2xbf16>, vector<2x96xbf16>, vector<6x96xf32> -> vector<6x96xf32>
    %20 = arith.addf %14, %19 : vector<6x96xf32>
    %cst_13 = arith.constant dense<0.000000e+00> : vector<96xf32>
    %21 = vector.multi_reduction <add>, %20, %cst_13 [0] : vector<6x96xf32> to vector<96xf32>
    %22 = vector.shape_cast %21 : vector<96xf32> to vector<1x96xf32>
    %23 = arith.truncf %22 : vector<1x96xf32> to vector<1x96xbf16>
    %c0_14 = arith.constant 0 : index
    %c0_15 = arith.constant 0 : index
    %24 = vector.load %arg3[%c0_14, %c0_15] : memref<96x96xbf16, #tpu.memory_space<vmem>>, vector<96x96xbf16>
    %cst_16 = arith.constant dense<0.000000e+00> : vector<1x96xf32>
    %25 = tpu.matmul %23, %24, %cst_16 {dimension_numbers = #tpu.dot_dimension_numbers<[1], [0], [0], [1], [0, 0, 1, 1], [], []>} : vector<1x96xbf16>, vector<96x96xbf16>, vector<1x96xf32> -> vector<1x96xf32>
    %cst_17 = arith.constant 0.055555556 : f32
    %26 = vector.broadcast %cst_17 : f32 to vector<1x96xf32>
    %27 = arith.mulf %25, %26 : vector<1x96xf32>
    %28 = vector.broadcast %27 : vector<1x96xf32> to vector<6x96xf32>
    %29 = arith.subf %20, %28 : vector<6x96xf32>
    %30 = arith.mulf %29, %29 : vector<6x96xf32>
    %cst_18 = arith.constant dense<0.000000e+00> : vector<96xf32>
    %31 = vector.multi_reduction <add>, %30, %cst_18 [0] : vector<6x96xf32> to vector<96xf32>
    %32 = vector.shape_cast %31 : vector<96xf32> to vector<1x96xf32>
    %33 = arith.truncf %32 : vector<1x96xf32> to vector<1x96xbf16>
    %c0_19 = arith.constant 0 : index
    %c0_20 = arith.constant 0 : index
    %34 = vector.load %arg3[%c0_19, %c0_20] : memref<96x96xbf16, #tpu.memory_space<vmem>>, vector<96x96xbf16>
    %cst_21 = arith.constant dense<0.000000e+00> : vector<1x96xf32>
    %35 = tpu.matmul %33, %34, %cst_21 {dimension_numbers = #tpu.dot_dimension_numbers<[1], [0], [0], [1], [0, 0, 1, 1], [], []>} : vector<1x96xbf16>, vector<96x96xbf16>, vector<1x96xf32> -> vector<1x96xf32>
    %cst_22 = arith.constant 0.055555556 : f32
    %36 = vector.broadcast %cst_22 : f32 to vector<1x96xf32>
    %37 = arith.mulf %35, %36 : vector<1x96xf32>
    %c0_23 = arith.constant 0 : index
    %c0_24 = arith.constant 0 : index
    %38 = vector.load %arg4[%c0_23, %c0_24] : memref<1x96xf32, #tpu.memory_space<vmem>>, vector<1x96xf32>
    %cst_25 = arith.constant 9.99999974E-6 : f32
    %39 = vector.broadcast %cst_25 : f32 to vector<1x96xf32>
    %40 = arith.addf %37, %39 : vector<1x96xf32>
    %41 = math.rsqrt %40 : vector<1x96xf32>
    %42 = arith.mulf %38, %41 : vector<1x96xf32>
    %43 = vector.broadcast %42 : vector<1x96xf32> to vector<6x96xf32>
    %44 = arith.mulf %29, %43 : vector<6x96xf32>
    %c0_26 = arith.constant 0 : index
    %c0_27 = arith.constant 0 : index
    %45 = vector.load %arg5[%c0_26, %c0_27] : memref<1x96xf32, #tpu.memory_space<vmem>>, vector<1x96xf32>
    %46 = vector.broadcast %45 : vector<1x96xf32> to vector<6x96xf32>
    %47 = arith.addf %44, %46 : vector<6x96xf32>
    %cst_28 = arith.constant 0.000000e+00 : f32
    %48 = vector.broadcast %cst_28 : f32 to vector<6x96xf32>
    %49 = arith.maximumf %47, %48 : vector<6x96xf32>
    %50 = arith.truncf %49 : vector<6x96xf32> to vector<6x96xbf16>
    %c0_29 = arith.constant 0 : index
    %c0_30 = arith.constant 0 : index
    %51 = vector.load %arg6[%c0_29, %c0_30] : memref<96x384xbf16, #tpu.memory_space<vmem>>, vector<96x384xbf16>
    %cst_31 = arith.constant dense<0.000000e+00> : vector<6x384xf32>
    %52 = tpu.matmul %50, %51, %cst_31 {dimension_numbers = #tpu.dot_dimension_numbers<[1], [0], [0], [1], [0, 0, 1, 1], [], []>} : vector<6x96xbf16>, vector<96x384xbf16>, vector<6x384xf32> -> vector<6x384xf32>
    %53 = vector.extract_strided_slice %52 {offsets = [0, 0], sizes = [6, 96], strides = [1, 1]} : vector<6x384xf32> to vector<6x96xf32>
    %54 = arith.truncf %53 : vector<6x96xf32> to vector<6x96xbf16>
    %c0_32 = arith.constant 0 : index
    %c0_33 = arith.constant 0 : index
    %c0_34 = arith.constant 0 : index
    %55 = vector.load %arg7[%c0_32, %c0_33, %c0_34] : memref<4x12x6xbf16, #tpu.memory_space<vmem>>, vector<1x12x6xbf16>
    %56 = vector.shape_cast %55 : vector<1x12x6xbf16> to vector<12x6xbf16>
    %cst_35 = arith.constant dense<0.000000e+00> : vector<12x96xf32>
    %57 = tpu.matmul %56, %54, %cst_35 {dimension_numbers = #tpu.dot_dimension_numbers<[1], [0], [0], [1], [0, 0, 1, 1], [], []>} : vector<12x6xbf16>, vector<6x96xbf16>, vector<12x96xf32> -> vector<12x96xf32>
    %58 = vector.extract_strided_slice %52 {offsets = [0, 96], sizes = [6, 96], strides = [1, 1]} : vector<6x384xf32> to vector<6x96xf32>
    %59 = arith.truncf %58 : vector<6x96xf32> to vector<6x96xbf16>
    %c1_36 = arith.constant 1 : index
    %c0_37 = arith.constant 0 : index
    %c0_38 = arith.constant 0 : index
    %60 = vector.load %arg7[%c1_36, %c0_37, %c0_38] : memref<4x12x6xbf16, #tpu.memory_space<vmem>>, vector<1x12x6xbf16>
    %61 = vector.shape_cast %60 : vector<1x12x6xbf16> to vector<12x6xbf16>
    %cst_39 = arith.constant dense<0.000000e+00> : vector<12x96xf32>
    %62 = tpu.matmul %61, %59, %cst_39 {dimension_numbers = #tpu.dot_dimension_numbers<[1], [0], [0], [1], [0, 0, 1, 1], [], []>} : vector<12x6xbf16>, vector<6x96xbf16>, vector<12x96xf32> -> vector<12x96xf32>
    %63 = arith.addf %57, %62 : vector<12x96xf32>
    %64 = vector.extract_strided_slice %52 {offsets = [0, 192], sizes = [6, 96], strides = [1, 1]} : vector<6x384xf32> to vector<6x96xf32>
    %65 = arith.truncf %64 : vector<6x96xf32> to vector<6x96xbf16>
    %c2_40 = arith.constant 2 : index
    %c0_41 = arith.constant 0 : index
    %c0_42 = arith.constant 0 : index
    %66 = vector.load %arg7[%c2_40, %c0_41, %c0_42] : memref<4x12x6xbf16, #tpu.memory_space<vmem>>, vector<1x12x6xbf16>
    %67 = vector.shape_cast %66 : vector<1x12x6xbf16> to vector<12x6xbf16>
    %cst_43 = arith.constant dense<0.000000e+00> : vector<12x96xf32>
    %68 = tpu.matmul %67, %65, %cst_43 {dimension_numbers = #tpu.dot_dimension_numbers<[1], [0], [0], [1], [0, 0, 1, 1], [], []>} : vector<12x6xbf16>, vector<6x96xbf16>, vector<12x96xf32> -> vector<12x96xf32>
    %69 = arith.addf %63, %68 : vector<12x96xf32>
    %70 = vector.extract_strided_slice %52 {offsets = [0, 288], sizes = [6, 96], strides = [1, 1]} : vector<6x384xf32> to vector<6x96xf32>
    %71 = arith.truncf %70 : vector<6x96xf32> to vector<6x96xbf16>
    %c3 = arith.constant 3 : index
    %c0_44 = arith.constant 0 : index
    %c0_45 = arith.constant 0 : index
    %72 = vector.load %arg7[%c3, %c0_44, %c0_45] : memref<4x12x6xbf16, #tpu.memory_space<vmem>>, vector<1x12x6xbf16>
    %73 = vector.shape_cast %72 : vector<1x12x6xbf16> to vector<12x6xbf16>
    %cst_46 = arith.constant dense<0.000000e+00> : vector<12x96xf32>
    %74 = tpu.matmul %73, %71, %cst_46 {dimension_numbers = #tpu.dot_dimension_numbers<[1], [0], [0], [1], [0, 0, 1, 1], [], []>} : vector<12x6xbf16>, vector<6x96xbf16>, vector<12x96xf32> -> vector<12x96xf32>
    %75 = arith.addf %69, %74 : vector<12x96xf32>
    %cst_47 = arith.constant dense<0.000000e+00> : vector<96xf32>
    %76 = vector.multi_reduction <add>, %75, %cst_47 [0] : vector<12x96xf32> to vector<96xf32>
    %77 = vector.shape_cast %76 : vector<96xf32> to vector<1x96xf32>
    %78 = arith.truncf %77 : vector<1x96xf32> to vector<1x96xbf16>
    %c0_48 = arith.constant 0 : index
    %c0_49 = arith.constant 0 : index
    %79 = vector.load %arg8[%c0_48, %c0_49] : memref<96x96xbf16, #tpu.memory_space<vmem>>, vector<96x96xbf16>
    %cst_50 = arith.constant dense<0.000000e+00> : vector<1x96xf32>
    %80 = tpu.matmul %78, %79, %cst_50 {dimension_numbers = #tpu.dot_dimension_numbers<[1], [0], [0], [1], [0, 0, 1, 1], [], []>} : vector<1x96xbf16>, vector<96x96xbf16>, vector<1x96xf32> -> vector<1x96xf32>
    %cst_51 = arith.constant 0.013888889 : f32
    %81 = vector.broadcast %cst_51 : f32 to vector<1x96xf32>
    %82 = arith.mulf %80, %81 : vector<1x96xf32>
    %83 = vector.broadcast %82 : vector<1x96xf32> to vector<12x96xf32>
    %84 = arith.subf %75, %83 : vector<12x96xf32>
    %85 = arith.mulf %84, %84 : vector<12x96xf32>
    %cst_52 = arith.constant dense<0.000000e+00> : vector<96xf32>
    %86 = vector.multi_reduction <add>, %85, %cst_52 [0] : vector<12x96xf32> to vector<96xf32>
    %87 = vector.shape_cast %86 : vector<96xf32> to vector<1x96xf32>
    %88 = arith.truncf %87 : vector<1x96xf32> to vector<1x96xbf16>
    %c0_53 = arith.constant 0 : index
    %c0_54 = arith.constant 0 : index
    %89 = vector.load %arg8[%c0_53, %c0_54] : memref<96x96xbf16, #tpu.memory_space<vmem>>, vector<96x96xbf16>
    %cst_55 = arith.constant dense<0.000000e+00> : vector<1x96xf32>
    %90 = tpu.matmul %88, %89, %cst_55 {dimension_numbers = #tpu.dot_dimension_numbers<[1], [0], [0], [1], [0, 0, 1, 1], [], []>} : vector<1x96xbf16>, vector<96x96xbf16>, vector<1x96xf32> -> vector<1x96xf32>
    %cst_56 = arith.constant 0.013888889 : f32
    %91 = vector.broadcast %cst_56 : f32 to vector<1x96xf32>
    %92 = arith.mulf %90, %91 : vector<1x96xf32>
    %c0_57 = arith.constant 0 : index
    %c0_58 = arith.constant 0 : index
    %93 = vector.load %arg9[%c0_57, %c0_58] : memref<1x96xf32, #tpu.memory_space<vmem>>, vector<1x96xf32>
    %cst_59 = arith.constant 9.99999974E-6 : f32
    %94 = vector.broadcast %cst_59 : f32 to vector<1x96xf32>
    %95 = arith.addf %92, %94 : vector<1x96xf32>
    %96 = math.rsqrt %95 : vector<1x96xf32>
    %97 = arith.mulf %93, %96 : vector<1x96xf32>
    %98 = vector.broadcast %97 : vector<1x96xf32> to vector<12x96xf32>
    %99 = arith.mulf %84, %98 : vector<12x96xf32>
    %c0_60 = arith.constant 0 : index
    %c0_61 = arith.constant 0 : index
    %100 = vector.load %arg10[%c0_60, %c0_61] : memref<1x96xf32, #tpu.memory_space<vmem>>, vector<1x96xf32>
    %101 = vector.broadcast %100 : vector<1x96xf32> to vector<12x96xf32>
    %102 = arith.addf %99, %101 : vector<12x96xf32>
    %cst_62 = arith.constant 0.000000e+00 : f32
    %103 = vector.broadcast %cst_62 : f32 to vector<12x96xf32>
    %104 = arith.maximumf %102, %103 : vector<12x96xf32>
    %105 = arith.truncf %104 : vector<12x96xf32> to vector<12x96xbf16>
    %c0_63 = arith.constant 0 : index
    %c0_64 = arith.constant 0 : index
    %106 = vector.load %arg11[%c0_63, %c0_64] : memref<96x312xbf16, #tpu.memory_space<vmem>>, vector<96x312xbf16>
    %cst_65 = arith.constant dense<0.000000e+00> : vector<12x312xf32>
    %107 = tpu.matmul %105, %106, %cst_65 {dimension_numbers = #tpu.dot_dimension_numbers<[1], [0], [0], [1], [0, 0, 1, 1], [], []>} : vector<12x96xbf16>, vector<96x312xbf16>, vector<12x312xf32> -> vector<12x312xf32>
    %108 = vector.extract_strided_slice %107 {offsets = [0, 0], sizes = [12, 104], strides = [1, 1]} : vector<12x312xf32> to vector<12x104xf32>
    %109 = arith.truncf %108 : vector<12x104xf32> to vector<12x104xbf16>
    %c0_66 = arith.constant 0 : index
    %c0_67 = arith.constant 0 : index
    %c0_68 = arith.constant 0 : index
    %110 = vector.load %arg12[%c0_66, %c0_67, %c0_68] : memref<3x26x12xbf16, #tpu.memory_space<vmem>>, vector<1x26x12xbf16>
    %111 = vector.shape_cast %110 : vector<1x26x12xbf16> to vector<26x12xbf16>
    %cst_69 = arith.constant dense<0.000000e+00> : vector<26x104xf32>
    %112 = tpu.matmul %111, %109, %cst_69 {dimension_numbers = #tpu.dot_dimension_numbers<[1], [0], [0], [1], [0, 0, 1, 1], [], []>} : vector<26x12xbf16>, vector<12x104xbf16>, vector<26x104xf32> -> vector<26x104xf32>
    %113 = vector.extract_strided_slice %107 {offsets = [0, 104], sizes = [12, 104], strides = [1, 1]} : vector<12x312xf32> to vector<12x104xf32>
    %114 = arith.truncf %113 : vector<12x104xf32> to vector<12x104xbf16>
    %c1_70 = arith.constant 1 : index
    %c0_71 = arith.constant 0 : index
    %c0_72 = arith.constant 0 : index
    %115 = vector.load %arg12[%c1_70, %c0_71, %c0_72] : memref<3x26x12xbf16, #tpu.memory_space<vmem>>, vector<1x26x12xbf16>
    %116 = vector.shape_cast %115 : vector<1x26x12xbf16> to vector<26x12xbf16>
    %cst_73 = arith.constant dense<0.000000e+00> : vector<26x104xf32>
    %117 = tpu.matmul %116, %114, %cst_73 {dimension_numbers = #tpu.dot_dimension_numbers<[1], [0], [0], [1], [0, 0, 1, 1], [], []>} : vector<26x12xbf16>, vector<12x104xbf16>, vector<26x104xf32> -> vector<26x104xf32>
    %118 = arith.addf %112, %117 : vector<26x104xf32>
    %119 = vector.extract_strided_slice %107 {offsets = [0, 208], sizes = [12, 104], strides = [1, 1]} : vector<12x312xf32> to vector<12x104xf32>
    %120 = arith.truncf %119 : vector<12x104xf32> to vector<12x104xbf16>
    %c2_74 = arith.constant 2 : index
    %c0_75 = arith.constant 0 : index
    %c0_76 = arith.constant 0 : index
    %121 = vector.load %arg12[%c2_74, %c0_75, %c0_76] : memref<3x26x12xbf16, #tpu.memory_space<vmem>>, vector<1x26x12xbf16>
    %122 = vector.shape_cast %121 : vector<1x26x12xbf16> to vector<26x12xbf16>
    %cst_77 = arith.constant dense<0.000000e+00> : vector<26x104xf32>
    %123 = tpu.matmul %122, %120, %cst_77 {dimension_numbers = #tpu.dot_dimension_numbers<[1], [0], [0], [1], [0, 0, 1, 1], [], []>} : vector<26x12xbf16>, vector<12x104xbf16>, vector<26x104xf32> -> vector<26x104xf32>
    %124 = arith.addf %118, %123 : vector<26x104xf32>
    %cst_78 = arith.constant dense<0.000000e+00> : vector<104xf32>
    %125 = vector.multi_reduction <add>, %124, %cst_78 [0] : vector<26x104xf32> to vector<104xf32>
    %126 = vector.shape_cast %125 : vector<104xf32> to vector<1x104xf32>
    %127 = arith.truncf %126 : vector<1x104xf32> to vector<1x104xbf16>
    %c0_79 = arith.constant 0 : index
    %c0_80 = arith.constant 0 : index
    %128 = vector.load %arg13[%c0_79, %c0_80] : memref<104x104xbf16, #tpu.memory_space<vmem>>, vector<104x104xbf16>
    %cst_81 = arith.constant dense<0.000000e+00> : vector<1x104xf32>
    %129 = tpu.matmul %127, %128, %cst_81 {dimension_numbers = #tpu.dot_dimension_numbers<[1], [0], [0], [1], [0, 0, 1, 1], [], []>} : vector<1x104xbf16>, vector<104x104xbf16>, vector<1x104xf32> -> vector<1x104xf32>
    %cst_82 = arith.constant 2.958580e-03 : f32
    %130 = vector.broadcast %cst_82 : f32 to vector<1x104xf32>
    %131 = arith.mulf %129, %130 : vector<1x104xf32>
    %132 = vector.broadcast %131 : vector<1x104xf32> to vector<26x104xf32>
    %133 = arith.subf %124, %132 : vector<26x104xf32>
    %134 = arith.mulf %133, %133 : vector<26x104xf32>
    %cst_83 = arith.constant dense<0.000000e+00> : vector<104xf32>
    %135 = vector.multi_reduction <add>, %134, %cst_83 [0] : vector<26x104xf32> to vector<104xf32>
    %136 = vector.shape_cast %135 : vector<104xf32> to vector<1x104xf32>
    %137 = arith.truncf %136 : vector<1x104xf32> to vector<1x104xbf16>
    %c0_84 = arith.constant 0 : index
    %c0_85 = arith.constant 0 : index
    %138 = vector.load %arg13[%c0_84, %c0_85] : memref<104x104xbf16, #tpu.memory_space<vmem>>, vector<104x104xbf16>
    %cst_86 = arith.constant dense<0.000000e+00> : vector<1x104xf32>
    %139 = tpu.matmul %137, %138, %cst_86 {dimension_numbers = #tpu.dot_dimension_numbers<[1], [0], [0], [1], [0, 0, 1, 1], [], []>} : vector<1x104xbf16>, vector<104x104xbf16>, vector<1x104xf32> -> vector<1x104xf32>
    %cst_87 = arith.constant 2.958580e-03 : f32
    %140 = vector.broadcast %cst_87 : f32 to vector<1x104xf32>
    %141 = arith.mulf %139, %140 : vector<1x104xf32>
    %c0_88 = arith.constant 0 : index
    %c0_89 = arith.constant 0 : index
    %142 = vector.load %arg14[%c0_88, %c0_89] : memref<1x104xf32, #tpu.memory_space<vmem>>, vector<1x104xf32>
    %cst_90 = arith.constant 9.99999974E-6 : f32
    %143 = vector.broadcast %cst_90 : f32 to vector<1x104xf32>
    %144 = arith.addf %141, %143 : vector<1x104xf32>
    %145 = math.rsqrt %144 : vector<1x104xf32>
    %146 = arith.mulf %142, %145 : vector<1x104xf32>
    %147 = vector.broadcast %146 : vector<1x104xf32> to vector<26x104xf32>
    %148 = arith.mulf %133, %147 : vector<26x104xf32>
    %c0_91 = arith.constant 0 : index
    %c0_92 = arith.constant 0 : index
    %149 = vector.load %arg15[%c0_91, %c0_92] : memref<1x104xf32, #tpu.memory_space<vmem>>, vector<1x104xf32>
    %150 = vector.broadcast %149 : vector<1x104xf32> to vector<26x104xf32>
    %151 = arith.addf %148, %150 : vector<26x104xf32>
    %cst_93 = arith.constant 0.000000e+00 : f32
    %152 = vector.broadcast %cst_93 : f32 to vector<26x104xf32>
    %153 = arith.maximumf %151, %152 : vector<26x104xf32>
    %154 = arith.truncf %153 : vector<26x104xf32> to vector<26x104xbf16>
    %c0_94 = arith.constant 0 : index
    %c0_95 = arith.constant 0 : index
    %155 = vector.load %arg16[%c0_94, %c0_95] : memref<104x112xbf16, #tpu.memory_space<vmem>>, vector<104x112xbf16>
    %cst_96 = arith.constant dense<0.000000e+00> : vector<26x112xf32>
    %156 = tpu.matmul %154, %155, %cst_96 {dimension_numbers = #tpu.dot_dimension_numbers<[1], [0], [0], [1], [0, 0, 1, 1], [], []>} : vector<26x104xbf16>, vector<104x112xbf16>, vector<26x112xf32> -> vector<26x112xf32>
    %157 = vector.extract_strided_slice %156 {offsets = [0, 0], sizes = [26, 28], strides = [1, 1]} : vector<26x112xf32> to vector<26x28xf32>
    %158 = arith.truncf %157 : vector<26x28xf32> to vector<26x28xbf16>
    %c0_97 = arith.constant 0 : index
    %c0_98 = arith.constant 0 : index
    %c0_99 = arith.constant 0 : index
    %159 = vector.load %arg17[%c0_97, %c0_98, %c0_99] : memref<4x56x26xbf16, #tpu.memory_space<vmem>>, vector<1x56x26xbf16>
    %160 = vector.shape_cast %159 : vector<1x56x26xbf16> to vector<56x26xbf16>
    %cst_100 = arith.constant dense<0.000000e+00> : vector<56x28xf32>
    %161 = tpu.matmul %160, %158, %cst_100 {dimension_numbers = #tpu.dot_dimension_numbers<[1], [0], [0], [1], [0, 0, 1, 1], [], []>} : vector<56x26xbf16>, vector<26x28xbf16>, vector<56x28xf32> -> vector<56x28xf32>
    %162 = vector.extract_strided_slice %156 {offsets = [0, 28], sizes = [26, 28], strides = [1, 1]} : vector<26x112xf32> to vector<26x28xf32>
    %163 = arith.truncf %162 : vector<26x28xf32> to vector<26x28xbf16>
    %c1_101 = arith.constant 1 : index
    %c0_102 = arith.constant 0 : index
    %c0_103 = arith.constant 0 : index
    %164 = vector.load %arg17[%c1_101, %c0_102, %c0_103] : memref<4x56x26xbf16, #tpu.memory_space<vmem>>, vector<1x56x26xbf16>
    %165 = vector.shape_cast %164 : vector<1x56x26xbf16> to vector<56x26xbf16>
    %cst_104 = arith.constant dense<0.000000e+00> : vector<56x28xf32>
    %166 = tpu.matmul %165, %163, %cst_104 {dimension_numbers = #tpu.dot_dimension_numbers<[1], [0], [0], [1], [0, 0, 1, 1], [], []>} : vector<56x26xbf16>, vector<26x28xbf16>, vector<56x28xf32> -> vector<56x28xf32>
    %167 = arith.addf %161, %166 : vector<56x28xf32>
    %168 = vector.extract_strided_slice %156 {offsets = [0, 56], sizes = [26, 28], strides = [1, 1]} : vector<26x112xf32> to vector<26x28xf32>
    %169 = arith.truncf %168 : vector<26x28xf32> to vector<26x28xbf16>
    %c2_105 = arith.constant 2 : index
    %c0_106 = arith.constant 0 : index
    %c0_107 = arith.constant 0 : index
    %170 = vector.load %arg17[%c2_105, %c0_106, %c0_107] : memref<4x56x26xbf16, #tpu.memory_space<vmem>>, vector<1x56x26xbf16>
    %171 = vector.shape_cast %170 : vector<1x56x26xbf16> to vector<56x26xbf16>
    %cst_108 = arith.constant dense<0.000000e+00> : vector<56x28xf32>
    %172 = tpu.matmul %171, %169, %cst_108 {dimension_numbers = #tpu.dot_dimension_numbers<[1], [0], [0], [1], [0, 0, 1, 1], [], []>} : vector<56x26xbf16>, vector<26x28xbf16>, vector<56x28xf32> -> vector<56x28xf32>
    %173 = arith.addf %167, %172 : vector<56x28xf32>
    %174 = vector.extract_strided_slice %156 {offsets = [0, 84], sizes = [26, 28], strides = [1, 1]} : vector<26x112xf32> to vector<26x28xf32>
    %175 = arith.truncf %174 : vector<26x28xf32> to vector<26x28xbf16>
    %c3_109 = arith.constant 3 : index
    %c0_110 = arith.constant 0 : index
    %c0_111 = arith.constant 0 : index
    %176 = vector.load %arg17[%c3_109, %c0_110, %c0_111] : memref<4x56x26xbf16, #tpu.memory_space<vmem>>, vector<1x56x26xbf16>
    %177 = vector.shape_cast %176 : vector<1x56x26xbf16> to vector<56x26xbf16>
    %cst_112 = arith.constant dense<0.000000e+00> : vector<56x28xf32>
    %178 = tpu.matmul %177, %175, %cst_112 {dimension_numbers = #tpu.dot_dimension_numbers<[1], [0], [0], [1], [0, 0, 1, 1], [], []>} : vector<56x26xbf16>, vector<26x28xbf16>, vector<56x28xf32> -> vector<56x28xf32>
    %179 = arith.addf %173, %178 : vector<56x28xf32>
    %c0_113 = arith.constant 0 : index
    %c0_114 = arith.constant 0 : index
    %180 = vector.load %arg18[%c0_113, %c0_114] : memref<1x28xf32, #tpu.memory_space<vmem>>, vector<1x28xf32>
    %181 = vector.broadcast %180 : vector<1x28xf32> to vector<56x28xf32>
    %182 = arith.addf %179, %181 : vector<56x28xf32>
    %183 = math.tanh %182 : vector<56x28xf32>
    %c0_115 = arith.constant 0 : index
    %c0_116 = arith.constant 0 : index
    %184 = vector.load %arg19[%c0_115, %c0_116] : memref<56x28xf32, #tpu.memory_space<vmem>>, vector<56x28xf32>
    tpu.vector_store %arg19[%c0_115, %c0_116], %183 {strides = array<i32>} : memref<56x28xf32, #tpu.memory_space<vmem>>, vector<56x28xf32>,
    return
  }
}

</mosaic_0001>

<llo_original>
// kernel: tpu_custom_call.1
$region0: #{tpu_custom_call.1}
  #allocation0 [shape = 'u32[]', space=smem, size = 0x4, offset = 0x4, fixed_abs, tag = 'smem constant byte address 0x4 - core index']
  #allocation1 [shape = 'u32[144,128]{1,0:T(1,128)}', space=vmem, size = 0x12000, scoped, tag = 'internal scratch']
  %s0 = inlined_call_operand.hbm [shape: f32[2,20], index: 0, kind: input, shape index: {}]
  %s1 = inlined_call_operand.hbm [shape: bf16[20,288], index: 1, kind: input, shape index: {}]
  %s2 = inlined_call_operand.vmem [shape: bf16[3,6,2], index: 2, kind: input, shape index: {}]
  %s3 = inlined_call_operand.hbm [shape: bf16[96,96], index: 3, kind: input, shape index: {}]
  %s4 = inlined_call_operand.hbm [shape: f32[1,96], index: 4, kind: input, shape index: {}]
  %s5 = inlined_call_operand.hbm [shape: f32[1,96], index: 5, kind: input, shape index: {}]
  %s6 = inlined_call_operand.vmem [shape: bf16[96,384], index: 6, kind: input, shape index: {}]
  %s7 = inlined_call_operand.vmem [shape: bf16[4,12,6], index: 7, kind: input, shape index: {}]
  %s8 = inlined_call_operand.hbm [shape: bf16[96,96], index: 8, kind: input, shape index: {}]
  %s9 = inlined_call_operand.hbm [shape: f32[1,96], index: 9, kind: input, shape index: {}]
  %s10 = inlined_call_operand.hbm [shape: f32[1,96], index: 10, kind: input, shape index: {}]
  %s11 = inlined_call_operand.vmem [shape: bf16[96,312], index: 11, kind: input, shape index: {}]
  %s12 = inlined_call_operand.vmem [shape: bf16[3,26,12], index: 12, kind: input, shape index: {}]
  %s13 = inlined_call_operand.vmem [shape: bf16[104,104], index: 13, kind: input, shape index: {}]
  %s14 = inlined_call_operand.vmem [shape: f32[1,104], index: 14, kind: input, shape index: {}]
  %s15 = inlined_call_operand.vmem [shape: f32[1,104], index: 15, kind: input, shape index: {}]
  %s16 = inlined_call_operand.hbm [shape: bf16[104,112], index: 16, kind: input, shape index: {}]
  %s17 = inlined_call_operand.vmem [shape: bf16[4,56,26], index: 17, kind: input, shape index: {}]
  %s18 = inlined_call_operand.vmem [shape: f32[1,28], index: 18, kind: input, shape index: {}]
  %s19 = inlined_call_operand.vmem [shape: f32[56,28], index: 19, kind: output, shape index: {}]
  %s20 = sld [smem:[#allocation0]]
  $region122: #{tpu_custom_call.1} parent=0
    _
  %s22 = ssub.s32 1, %s20
  %s23 = scalar_select 0, %s22, %s20
  $region1: #{tpu_custom_call.1} parent=0
    #allocation2 [shape = 'u8[1024]{0}', space=vmem, size = 0x400, scoped, tag = 'input window, operand 0, single buffered']
    #allocation3 [shape = 's32[1]{0}', space=sflag, size = 0x4, scoped, tag = 'scoped memory for tpu_custom_call.1']
    #allocation4 [shape = 'u8[18432]{0}', space=vmem, size = 0x4800, scoped, tag = 'input window, operand 1, single buffered']
    #allocation5 [shape = 's32[1]{0}', space=sflag, size = 0x4, scoped, tag = 'scoped memory for tpu_custom_call.1']
    #allocation6 [shape = 'u8[24576]{0}', space=vmem, size = 0x6000, scoped, tag = 'input window, operand 3, single buffered']
    #allocation7 [shape = 'u8[512]{0}', space=vmem, size = 0x400, scoped, tag = 'input window, operand 4, single buffered']
    #allocation8 [shape = 's32[1]{0}', space=sflag, size = 0x4, scoped, tag = 'scoped memory for tpu_custom_call.1']
    #allocation9 [shape = 'u8[512]{0}', space=vmem, size = 0x400, scoped, tag = 'input window, operand 5, single buffered']
    #allocation10 [shape = 'u8[24576]{0}', space=vmem, size = 0x6000, scoped, tag = 'input window, operand 8, single buffered']
    #allocation11 [shape = 's32[1]{0}', space=sflag, size = 0x4, scoped, tag = 'scoped memory for tpu_custom_call.1']
    #allocation12 [shape = 'u8[512]{0}', space=vmem, size = 0x400, scoped, tag = 'input window, operand 9, single buffered']
    #allocation13 [shape = 'u8[512]{0}', space=vmem, size = 0x400, scoped, tag = 'input window, operand 10, single buffered']
    #allocation14 [shape = 's32[1]{0}', space=sflag, size = 0x4, scoped, tag = 'scoped memory for tpu_custom_call.1']
    #allocation15 [shape = 'u8[26624]{0}', space=vmem, size = 0x6800, scoped, tag = 'input window, operand 16, single buffered']
    %24 = vsyncpa [#allocation3], 0
    %25 = vsyncpa [#allocation5], 0
    %26 = vsyncpa [#allocation8], 0
    %27 = vsyncpa [#allocation11], 0
    %28 = vsyncpa [#allocation14], 0
    // Predicated region
    $region2: #{tpu_custom_call.1} parent=1 // pred_check
      _
    $region3: #{tpu_custom_call.1} parent=1 // pred_check_branch
      %30 = sbr.rel (0) target = $region5
    $region4: #{tpu_custom_call.1} parent=1 // pred_region
      %s32 = ssub.s32 32, 32
      %33 = vsyncadd [#allocation3], %s32
      %s35 = sshll.u32 [#allocation2], 4
      %s36 = int_to_ptr.vmem [resolvable:$true] %s35
      %38 = dma.hbm_to_vmem [thread:$0]  %s0, 32, %s36, [#allocation3]
    $region5: #{tpu_custom_call.1} parent=1 // pred_fallthru
      _
    // Predicated region
    $region6: #{tpu_custom_call.1} parent=1 // pred_check
      _
    $region7: #{tpu_custom_call.1} parent=1 // pred_check_branch
      %40 = sbr.rel (0) target = $region9
    $region8: #{tpu_custom_call.1} parent=1 // pred_region
      %s42 = ssub.s32 576, 576
      %43 = vsyncadd [#allocation5], %s42
      %s44 = sshll.u32 [#allocation4], 4
      %s45 = int_to_ptr.vmem [resolvable:$true] %s44
      %50 = dma.hbm_to_vmem [thread:$0]  %s1, 576, %s45, [#allocation5], 192, 192, 12
    $region9: #{tpu_custom_call.1} parent=1 // pred_fallthru
      _
    // Predicated region
    $region10: #{tpu_custom_call.1} parent=1 // pred_check
      _
    $region11: #{tpu_custom_call.1} parent=1 // pred_check_branch
      %52 = sbr.rel (0) target = $region13
    $region12: #{tpu_custom_call.1} parent=1 // pred_region
      _
    $region13: #{tpu_custom_call.1} parent=1 // pred_fallthru
      _
    // Predicated region
    $region14: #{tpu_custom_call.1} parent=1 // pred_check
      _
    $region15: #{tpu_custom_call.1} parent=1 // pred_check_branch
      %54 = sbr.rel (0) target = $region17
    $region16: #{tpu_custom_call.1} parent=1 // pred_region
      %s56 = ssub.s32 768, 768
      %57 = vsyncadd [#allocation5], %s56
      %s58 = sshll.u32 [#allocation6], 4
      %s59 = int_to_ptr.vmem [resolvable:$true] %s58
      %64 = dma.hbm_to_vmem [thread:$0]  %s3, 768, %s59, [#allocation5], 64, 64, 4
    $region17: #{tpu_custom_call.1} parent=1 // pred_fallthru
      _
    // Predicated region
    $region18: #{tpu_custom_call.1} parent=1 // pred_check
      _
    $region19: #{tpu_custom_call.1} parent=1 // pred_check_branch
      %66 = sbr.rel (0) target = $region21
    $region20: #{tpu_custom_call.1} parent=1 // pred_region
      %s68 = ssub.s32 16, 16
      %69 = vsyncadd [#allocation8], %s68
      %s71 = sshll.u32 [#allocation7], 4
      %s72 = int_to_ptr.vmem [resolvable:$true] %s71
      %74 = dma.hbm_to_vmem [thread:$0]  %s4, 16, %s72, [#allocation8]
    $region21: #{tpu_custom_call.1} parent=1 // pred_fallthru
      _
    // Predicated region
    $region22: #{tpu_custom_call.1} parent=1 // pred_check
      _
    $region23: #{tpu_custom_call.1} parent=1 // pred_check_branch
      %76 = sbr.rel (0) target = $region25
    $region24: #{tpu_custom_call.1} parent=1 // pred_region
      %s78 = ssub.s32 16, 16
      %79 = vsyncadd [#allocation8], %s78
      %s81 = sshll.u32 [#allocation9], 4
      %s82 = int_to_ptr.vmem [resolvable:$true] %s81
      %84 = dma.hbm_to_vmem [thread:$0]  %s5, 16, %s82, [#allocation8]
    $region25: #{tpu_custom_call.1} parent=1 // pred_fallthru
      _
    // Predicated region
    $region26: #{tpu_custom_call.1} parent=1 // pred_check
      _
    $region27: #{tpu_custom_call.1} parent=1 // pred_check_branch
      %86 = sbr.rel (0) target = $region29
    $region28: #{tpu_custom_call.1} parent=1 // pred_region
      _
    $region29: #{tpu_custom_call.1} parent=1 // pred_fallthru
      _
    // Predicated region
    $region30: #{tpu_custom_call.1} parent=1 // pred_check
      _
    $region31: #{tpu_custom_call.1} parent=1 // pred_check_branch
      %88 = sbr.rel (0) target = $region33
    $region32: #{tpu_custom_call.1} parent=1 // pred_region
      _
    $region33: #{tpu_custom_call.1} parent=1 // pred_fallthru
      _
    // Predicated region
    $region34: #{tpu_custom_call.1} parent=1 // pred_check
      _
    $region35: #{tpu_custom_call.1} parent=1 // pred_check_branch
      %90 = sbr.rel (0) target = $region37
    $region36: #{tpu_custom_call.1} parent=1 // pred_region
      %s92 = ssub.s32 768, 768
      %93 = vsyncadd [#allocation11], %s92
      %s94 = sshll.u32 [#allocation10], 4
      %s95 = int_to_ptr.vmem [resolvable:$true] %s94
      %100 = dma.hbm_to_vmem [thread:$0]  %s8, 768, %s95, [#allocation11], 64, 64, 4
    $region37: #{tpu_custom_call.1} parent=1 // pred_fallthru
      _
    // Predicated region
    $region38: #{tpu_custom_call.1} parent=1 // pred_check
      _
    $region39: #{tpu_custom_call.1} parent=1 // pred_check_branch
      %102 = sbr.rel (0) target = $region41
    $region40: #{tpu_custom_call.1} parent=1 // pred_region
      %s104 = ssub.s32 16, 16
      %105 = vsyncadd [#allocation11], %s104
      %s107 = sshll.u32 [#allocation12], 4
      %s108 = int_to_ptr.vmem [resolvable:$true] %s107
      %110 = dma.hbm_to_vmem [thread:$0]  %s9, 16, %s108, [#allocation11]
    $region41: #{tpu_custom_call.1} parent=1 // pred_fallthru
      _
    // Predicated region
    $region42: #{tpu_custom_call.1} parent=1 // pred_check
      _
    $region43: #{tpu_custom_call.1} parent=1 // pred_check_branch
      %112 = sbr.rel (0) target = $region45
    $region44: #{tpu_custom_call.1} parent=1 // pred_region
      %s114 = ssub.s32 16, 16
      %115 = vsyncadd [#allocation14], %s114
      %s117 = sshll.u32 [#allocation13], 4
      %s118 = int_to_ptr.vmem [resolvable:$true] %s117
      %120 = dma.hbm_to_vmem [thread:$0]  %s10, 16, %s118, [#allocation14]
    $region45: #{tpu_custom_call.1} parent=1 // pred_fallthru
      _
    // Predicated region
    $region46: #{tpu_custom_call.1} parent=1 // pred_check
      _
    $region47: #{tpu_custom_call.1} parent=1 // pred_check_branch
      %122 = sbr.rel (0) target = $region49
    $region48: #{tpu_custom_call.1} parent=1 // pred_region
      _
    $region49: #{tpu_custom_call.1} parent=1 // pred_fallthru
      _
    // Predicated region
    $region50: #{tpu_custom_call.1} parent=1 // pred_check
      _
    $region51: #{tpu_custom_call.1} parent=1 // pred_check_branch
      %124 = sbr.rel (0) target = $region53
    $region52: #{tpu_custom_call.1} parent=1 // pred_region
      _
    $region53: #{tpu_custom_call.1} parent=1 // pred_fallthru
      _
    // Predicated region
    $region54: #{tpu_custom_call.1} parent=1 // pred_check
      _
    $region55: #{tpu_custom_call.1} parent=1 // pred_check_branch
      %126 = sbr.rel (0) target = $region57
    $region56: #{tpu_custom_call.1} parent=1 // pred_region
      _
    $region57: #{tpu_custom_call.1} parent=1 // pred_fallthru
      _
    // Predicated region
    $region58: #{tpu_custom_call.1} parent=1 // pred_check
      _
    $region59: #{tpu_custom_call.1} parent=1 // pred_check_branch
      %128 = sbr.rel (0) target = $region61
    $region60: #{tpu_custom_call.1} parent=1 // pred_region
      _
    $region61: #{tpu_custom_call.1} parent=1 // pred_fallthru
      _
    // Predicated region
    $region62: #{tpu_custom_call.1} parent=1 // pred_check
      _
    $region63: #{tpu_custom_call.1} parent=1 // pred_check_branch
      %130 = sbr.rel (0) target = $region65
    $region64: #{tpu_custom_call.1} parent=1 // pred_region
      _
    $region65: #{tpu_custom_call.1} parent=1 // pred_fallthru
      _
    // Predicated region
    $region66: #{tpu_custom_call.1} parent=1 // pred_check
      _
    $region67: #{tpu_custom_call.1} parent=1 // pred_check_branch
      %132 = sbr.rel (0) target = $region69
    $region68: #{tpu_custom_call.1} parent=1 // pred_region
      %s134 = ssub.s32 832, 832
      %135 = vsyncadd [#allocation14], %s134
      %s136 = sshll.u32 [#allocation15], 4
      %s137 = int_to_ptr.vmem [resolvable:$true] %s136
      %142 = dma.hbm_to_vmem [thread:$0]  %s16, 832, %s137, [#allocation14], 64, 64, 4
    $region69: #{tpu_custom_call.1} parent=1 // pred_fallthru
      _
    // Predicated region
    $region70: #{tpu_custom_call.1} parent=1 // pred_check
      _
    $region71: #{tpu_custom_call.1} parent=1 // pred_check_branch
      %144 = sbr.rel (0) target = $region73
    $region72: #{tpu_custom_call.1} parent=1 // pred_region
      _
    $region73: #{tpu_custom_call.1} parent=1 // pred_fallthru
      _
    // Predicated region
    $region74: #{tpu_custom_call.1} parent=1 // pred_check
      _
    $region75: #{tpu_custom_call.1} parent=1 // pred_check_branch
      %146 = sbr.rel (0) target = $region77
    $region76: #{tpu_custom_call.1} parent=1 // pred_region
      _
    $region77: #{tpu_custom_call.1} parent=1 // pred_fallthru
      _
    // Predicated region
    $region78: #{tpu_custom_call.1} parent=1 // pred_check
      _
    $region79: #{tpu_custom_call.1} parent=1 // pred_check_branch
      %148 = sbr.rel (0) target = $region81
    $region80: #{tpu_custom_call.1} parent=1 // pred_region
      %149 = dma.done [#allocation3], 32
    $region81: #{tpu_custom_call.1} parent=1 // pred_fallthru
      _
    // Predicated region
    $region82: #{tpu_custom_call.1} parent=1 // pred_check
      _
    $region83: #{tpu_custom_call.1} parent=1 // pred_check_branch
      %151 = sbr.rel (0) target = $region85
    $region84: #{tpu_custom_call.1} parent=1 // pred_region
      %152 = dma.done [#allocation5], 576
    $region85: #{tpu_custom_call.1} parent=1 // pred_fallthru
      _
    // Predicated region
    $region86: #{tpu_custom_call.1} parent=1 // pred_check
      _
    $region87: #{tpu_custom_call.1} parent=1 // pred_check_branch
      %154 = sbr.rel (0) target = $region89
    $region88: #{tpu_custom_call.1} parent=1 // pred_region
      %155 = dma.done [#allocation5], 768
    $region89: #{tpu_custom_call.1} parent=1 // pred_fallthru
      _
    // Predicated region
    $region90: #{tpu_custom_call.1} parent=1 // pred_check
      _
    $region91: #{tpu_custom_call.1} parent=1 // pred_check_branch
      %157 = sbr.rel (0) target = $region93
    $region92: #{tpu_custom_call.1} parent=1 // pred_region
      %158 = dma.done [#allocation8], 16
    $region93: #{tpu_custom_call.1} parent=1 // pred_fallthru
      _
    // Predicated region
    $region94: #{tpu_custom_call.1} parent=1 // pred_check
      _
    $region95: #{tpu_custom_call.1} parent=1 // pred_check_branch
      %160 = sbr.rel (0) target = $region97
    $region96: #{tpu_custom_call.1} parent=1 // pred_region
      %161 = dma.done [#allocation8], 16
    $region97: #{tpu_custom_call.1} parent=1 // pred_fallthru
      _
    // Predicated region
    $region98: #{tpu_custom_call.1} parent=1 // pred_check
      _
    $region99: #{tpu_custom_call.1} parent=1 // pred_check_branch
      %163 = sbr.rel (0) target = $region101
    $region100: #{tpu_custom_call.1} parent=1 // pred_region
      %164 = dma.done [#allocation11], 768
    $region101: #{tpu_custom_call.1} parent=1 // pred_fallthru
      _
    // Predicated region
    $region102: #{tpu_custom_call.1} parent=1 // pred_check
      _
    $region103: #{tpu_custom_call.1} parent=1 // pred_check_branch
      %166 = sbr.rel (0) target = $region105
    $region104: #{tpu_custom_call.1} parent=1 // pred_region
      %167 = dma.done [#allocation11], 16
    $region105: #{tpu_custom_call.1} parent=1 // pred_fallthru
      _
    // Predicated region
    $region106: #{tpu_custom_call.1} parent=1 // pred_check
      _
    $region107: #{tpu_custom_call.1} parent=1 // pred_check_branch
      %169 = sbr.rel (0) target = $region109
    $region108: #{tpu_custom_call.1} parent=1 // pred_region
      %170 = dma.done [#allocation14], 16
    $region109: #{tpu_custom_call.1} parent=1 // pred_fallthru
      _
    // Predicated region
    $region110: #{tpu_custom_call.1} parent=1 // pred_check
      _
    $region111: #{tpu_custom_call.1} parent=1 // pred_check_branch
      %172 = sbr.rel (0) target = $region113
    $region112: #{tpu_custom_call.1} parent=1 // pred_region
      %173 = dma.done [#allocation14], 832
    $region113: #{tpu_custom_call.1} parent=1 // pred_fallthru
      _
    %v175 = vld [vmem:[#allocation2] sm:$0x3]
    %v176 = vpack.c.bf16 %v175, %v175
    %v177 = vld [vmem:[#allocation4] sm:$0xff]
    %v178 = vld [vmem:[#allocation4 + $0x8] sm:$0xf]
    %v179 = vld [vmem:[#allocation4 + $0xc] sm:$0xff]
    %v180 = vld [vmem:[#allocation4 + $0x14] sm:$0xf]
    %v181 = vld [vmem:[#allocation4 + $0x18] sm:$0x33]
    %v182 = vld [vmem:[#allocation4 + $0x20] sm:$0x3]
    %v189 = vunpack.c.l.b16 %v177
    %v190 = vunpack.c.h.b16 %v177
    %v191 = vunpack.c.l.b16 %v178
    %v192 = vunpack.c.l.b16 %v179
    %v193 = vunpack.c.h.b16 %v179
    %v194 = vunpack.c.l.b16 %v180
    %v195 = vunpack.c.l.b16 %v181
    %v196 = vunpack.c.h.b16 %v181
    %v197 = vunpack.c.l.b16 %v182
    %v198 = vpack.c.b16 %v192, %v189
    %v199 = vpack.c.b16 %v193, %v190
    %v200 = vpack.c.b16 %v194, %v191
    %v201 = vpack.c.b16 %v195, %v195
    %v202 = vpack.c.b16 %v196, %v196
    %v203 = vpack.c.b16 %v197, %v197
    %vm207 = vcmask 162816
    %v209 = vsel %vm207, %v176, 0
    %vm211 = vcmask 1041408
    %v213 = vsel %vm211, %v201, 0
    %v216 = vsel %vm211, %v202, 0
    %v219 = vsel %vm211, %v203, 0
    %221 = vmatprep.subr.bf16.mxu0 %v199
    %222 = vmatpush1.bf16.msra.mxu0 %v198
    %223 = vmatprep.subr.bf16.mxu0 %v216
    %224 = vmatpush1.bf16.msra.mxu0 %v213
    %225 = vmatprep.subr.bf16.mxu0 0
    %226 = vmatpush1.bf16.msra.mxu0 0
    %227 = vmatprep.subr.bf16.mxu0 0
    %228 = vmatpush1.bf16.msra.mxu0 0
    %229 = vmatprep.subr.bf16.mxu0 0
    %230 = vmatpush1.bf16.msra.mxu0 0
    %231 = vmatprep.subr.bf16.mxu0 0
    %232 = vmatpush1.bf16.msra.mxu0 0
    %233 = vmatprep.subr.bf16.mxu0 0
    %234 = vmatpush1.bf16.msra.mxu0 0
    %235 = vmatprep.subr.bf16.mxu0 0
    %236 = vmatpush1.bf16.msra.mxu0 0
    %237 = vmatprep.subr.bf16.mxu0 0
    %238 = vmatpush1.bf16.msra.mxu0 0
    %239 = vmatprep.subr.bf16.mxu0 0
    %240 = vmatpush1.bf16.msra.mxu0 0
    %241 = vmatprep.subr.bf16.mxu0 0
    %242 = vmatpush1.bf16.msra.mxu0 0
    %243 = vmatprep.subr.bf16.mxu0 0
    %244 = vmatpush1.bf16.msra.mxu0 0
    %245 = vmatprep.subr.bf16.mxu0 0
    %246 = vmatpush1.bf16.msra.mxu0 0
    %247 = vmatprep.subr.bf16.mxu0 0
    %248 = vmatpush1.bf16.msra.mxu0 0
    %249 = vmatprep.subr.bf16.mxu0 0
    %250 = vmatpush1.bf16.msra.mxu0 0
    %251 = vmatprep.subr.bf16.mxu0 0
    %252 = vmatpush1.bf16.msra.mxu0 0
    %253 = vmatprep.mubr.bf16.mxu0 0
    %254 = vmatmul.mubr.bf16.gmra.mrb[0].mxu0 %v209
    %v255 = vpop.f32.mrb[0].mxu0
    %v256 = vadd.f32 0.0, %v255
    %v257 = vpop.f32.mrb[0].mxu0
    %v258 = vadd.f32 0.0, %v257
    %v259 = vpop.f32.mrb[0].mxu0
    %v260 = vpop.f32.mrb[0].mxu0
    %261 = vdwg.mxu0
    %262 = vmatprep.subr.bf16.mxu0 0
    %263 = vmatpush1.bf16.msra.mxu0 %v200
    %264 = vmatprep.subr.bf16.mxu0 0
    %265 = vmatpush1.bf16.msra.mxu0 %v219
    %266 = vmatprep.subr.bf16.mxu0 0
    %267 = vmatpush1.bf16.msra.mxu0 0
    %268 = vmatprep.subr.bf16.mxu0 0
    %269 = vmatpush1.bf16.msra.mxu0 0
    %270 = vmatprep.subr.bf16.mxu0 0
    %271 = vmatpush1.bf16.msra.mxu0 0
    %272 = vmatprep.subr.bf16.mxu0 0
    %273 = vmatpush1.bf16.msra.mxu0 0
    %274 = vmatprep.subr.bf16.mxu0 0
    %275 = vmatpush1.bf16.msra.mxu0 0
    %276 = vmatprep.subr.bf16.mxu0 0
    %277 = vmatpush1.bf16.msra.mxu0 0
    %278 = vmatprep.subr.bf16.mxu0 0
    %279 = vmatpush1.bf16.msra.mxu0 0
    %280 = vmatprep.subr.bf16.mxu0 0
    %281 = vmatpush1.bf16.msra.mxu0 0
    %282 = vmatprep.subr.bf16.mxu0 0
    %283 = vmatpush1.bf16.msra.mxu0 0
    %284 = vmatprep.subr.bf16.mxu0 0
    %285 = vmatpush1.bf16.msra.mxu0 0
    %286 = vmatprep.subr.bf16.mxu0 0
    %287 = vmatpush1.bf16.msra.mxu0 0
    %288 = vmatprep.subr.bf16.mxu0 0
    %289 = vmatpush1.bf16.msra.mxu0 0
    %290 = vmatprep.subr.bf16.mxu0 0
    %291 = vmatpush1.bf16.msra.mxu0 0
    %292 = vmatprep.subr.bf16.mxu0 0
    %293 = vmatpush1.bf16.msra.mxu0 0
    %294 = vmatprep.mubr.bf16.mxu0 0
    %295 = vmatmul.mubr.bf16.gmra.mrb[0].mxu0 %v209
    %v296 = vpop.f32.mrb[0].mxu0
    %v297 = vadd.f32 0.0, %v296
    %v298 = vpop.f32.mrb[0].mxu0
    %v299 = vpop.f32.mrb[0].mxu0
    %v300 = vpop.f32.mrb[0].mxu0
    %301 = vdwg.mxu0
    %v302 = vpack.c.bf16 %v256, %v256
    %v303 = vld [vmem:[%s2] sm:$0x7]
    %v304 = vpack.c.bf16 %v258, %v258
    %s305 = scalar_lea.vmem %s2, 4
    %v306 = vld [vmem:[%s305] sm:$0x7]
    %309 = vrot.lane.b32.xlu0 %v302, 32
    %v310 = vpop.permute.xlu0 %309
    %311 = vrot.lane.b32.xlu0 %v304, 32
    %v312 = vpop.permute.xlu0 %311
    %vm313 = vcmask 261120
    %v314 = vsel %vm313, %v310, %v312
    %vm315 = vcmask 15360
    %v317 = vsel %vm315, %v306, 0
    %vm319 = vcmask 1040384
    %v321 = vsel %vm319, %v314, 0
    %323 = vmatprep.subr.bf16.mxu0 0
    %324 = vmatpush1.bf16.msra.mxu0 %v321
    %325 = vmatprep.subr.bf16.mxu0 0
    %326 = vmatpush1.bf16.msra.mxu0 0
    %327 = vmatprep.subr.bf16.mxu0 0
    %328 = vmatpush1.bf16.msra.mxu0 0
    %329 = vmatprep.subr.bf16.mxu0 0
    %330 = vmatpush1.bf16.msra.mxu0 0
    %331 = vmatprep.subr.bf16.mxu0 0
    %332 = vmatpush1.bf16.msra.mxu0 0
    %333 = vmatprep.subr.bf16.mxu0 0
    %334 = vmatpush1.bf16.msra.mxu0 0
    %335 = vmatprep.subr.bf16.mxu0 0
    %336 = vmatpush1.bf16.msra.mxu0 0
    %337 = vmatprep.subr.bf16.mxu0 0
    %338 = vmatpush1.bf16.msra.mxu0 0
    %339 = vmatprep.subr.bf16.mxu0 0
    %340 = vmatpush1.bf16.msra.mxu0 0
    %341 = vmatprep.subr.bf16.mxu0 0
    %342 = vmatpush1.bf16.msra.mxu0 0
    %343 = vmatprep.subr.bf16.mxu0 0
    %344 = vmatpush1.bf16.msra.mxu0 0
    %345 = vmatprep.subr.bf16.mxu0 0
    %346 = vmatpush1.bf16.msra.mxu0 0
    %347 = vmatprep.subr.bf16.mxu0 0
    %348 = vmatpush1.bf16.msra.mxu0 0
    %349 = vmatprep.subr.bf16.mxu0 0
    %350 = vmatpush1.bf16.msra.mxu0 0
    %351 = vmatprep.subr.bf16.mxu0 0
    %352 = vmatpush1.bf16.msra.mxu0 0
    %353 = vmatprep.subr.bf16.mxu0 0
    %354 = vmatpush1.bf16.msra.mxu0 0
    %355 = vmatprep.mubr.bf16.mxu0 0
    %356 = vmatmul.mubr.bf16.gmra.mrb[0].mxu0 %v317
    %v357 = vpop.f32.mrb[0].mxu0
    %v358 = vadd.f32 0.0, %v357
    %v359 = vpop.f32.mrb[0].mxu0
    %v360 = vpop.f32.mrb[0].mxu0
    %v361 = vpop.f32.mrb[0].mxu0
    %362 = vdwg.mxu0
    %v364 = vsel %vm315, %v303, 0
    %v367 = vsel %vm319, %v302, 0
    %369 = vmatprep.subr.bf16.mxu0 0
    %370 = vmatpush1.bf16.msra.mxu0 %v367
    %371 = vmatprep.subr.bf16.mxu0 0
    %372 = vmatpush1.bf16.msra.mxu0 0
    %373 = vmatprep.subr.bf16.mxu0 0
    %374 = vmatpush1.bf16.msra.mxu0 0
    %375 = vmatprep.subr.bf16.mxu0 0
    %376 = vmatpush1.bf16.msra.mxu0 0
    %377 = vmatprep.subr.bf16.mxu0 0
    %378 = vmatpush1.bf16.msra.mxu0 0
    %379 = vmatprep.subr.bf16.mxu0 0
    %380 = vmatpush1.bf16.msra.mxu0 0
    %381 = vmatprep.subr.bf16.mxu0 0
    %382 = vmatpush1.bf16.msra.mxu0 0
    %383 = vmatprep.subr.bf16.mxu0 0
    %384 = vmatpush1.bf16.msra.mxu0 0
    %385 = vmatprep.subr.bf16.mxu0 0
    %386 = vmatpush1.bf16.msra.mxu0 0
    %387 = vmatprep.subr.bf16.mxu0 0
    %388 = vmatpush1.bf16.msra.mxu0 0
    %389 = vmatprep.subr.bf16.mxu0 0
    %390 = vmatpush1.bf16.msra.mxu0 0
    %391 = vmatprep.subr.bf16.mxu0 0
    %392 = vmatpush1.bf16.msra.mxu0 0
    %393 = vmatprep.subr.bf16.mxu0 0
    %394 = vmatpush1.bf16.msra.mxu0 0
    %395 = vmatprep.subr.bf16.mxu0 0
    %396 = vmatpush1.bf16.msra.mxu0 0
    %397 = vmatprep.subr.bf16.mxu0 0
    %398 = vmatpush1.bf16.msra.mxu0 0
    %399 = vmatprep.subr.bf16.mxu0 0
    %400 = vmatpush1.bf16.msra.mxu0 0
    %401 = vmatprep.mubr.bf16.mxu0 0
    %402 = vmatmul.mubr.bf16.gmra.mrb[0].mxu0 %v364
    %v403 = vpop.f32.mrb[0].mxu0
    %v404 = vadd.f32 %v358, %v403
    %v405 = vpop.f32.mrb[0].mxu0
    %v406 = vpop.f32.mrb[0].mxu0
    %v407 = vpop.f32.mrb[0].mxu0
    %408 = vdwg.mxu0
    %v409 = vpack.c.bf16 %v297, %v297
    %s410 = scalar_lea.vmem %s2, 8
    %v411 = vld [vmem:[%s410] sm:$0x7]
    %413 = vrot.lane.b32.xlu0 %v304, 64
    %v414 = vpop.permute.xlu0 %413
    %415 = vrot.lane.b32.xlu0 %v409, 64
    %v416 = vpop.permute.xlu0 %415
    %vm417 = vcmask 523264
    %v418 = vsel %vm417, %v414, %v416
    %v420 = vsel %vm315, %v411, 0
    %v423 = vsel %vm319, %v418, 0
    %425 = vmatprep.subr.bf16.mxu0 0
    %426 = vmatpush1.bf16.msra.mxu0 %v423
    %427 = vmatprep.subr.bf16.mxu0 0
    %428 = vmatpush1.bf16.msra.mxu0 0
    %429 = vmatprep.subr.bf16.mxu0 0
    %430 = vmatpush1.bf16.msra.mxu0 0
    %431 = vmatprep.subr.bf16.mxu0 0
    %432 = vmatpush1.bf16.msra.mxu0 0
    %433 = vmatprep.subr.bf16.mxu0 0
    %434 = vmatpush1.bf16.msra.mxu0 0
    %435 = vmatprep.subr.bf16.mxu0 0
    %436 = vmatpush1.bf16.msra.mxu0 0
    %437 = vmatprep.subr.bf16.mxu0 0
    %438 = vmatpush1.bf16.msra.mxu0 0
    %439 = vmatprep.subr.bf16.mxu0 0
    %440 = vmatpush1.bf16.msra.mxu0 0
    %441 = vmatprep.subr.bf16.mxu0 0
    %442 = vmatpush1.bf16.msra.mxu0 0
    %443 = vmatprep.subr.bf16.mxu0 0
    %444 = vmatpush1.bf16.msra.mxu0 0
    %445 = vmatprep.subr.bf16.mxu0 0
    %446 = vmatpush1.bf16.msra.mxu0 0
    %447 = vmatprep.subr.bf16.mxu0 0
    %448 = vmatpush1.bf16.msra.mxu0 0
    %449 = vmatprep.subr.bf16.mxu0 0
    %450 = vmatpush1.bf16.msra.mxu0 0
    %451 = vmatprep.subr.bf16.mxu0 0
    %452 = vmatpush1.bf16.msra.mxu0 0
    %453 = vmatprep.subr.bf16.mxu0 0
    %454 = vmatpush1.bf16.msra.mxu0 0
    %455 = vmatprep.subr.bf16.mxu0 0
    %456 = vmatpush1.bf16.msra.mxu0 0
    %457 = vmatprep.mubr.bf16.mxu0 0
    %458 = vmatmul.mubr.bf16.gmra.mrb[0].mxu0 %v420
    %v459 = vpop.f32.mrb[0].mxu0
    %v460 = vadd.f32 0.0, %v459
    %v461 = vpop.f32.mrb[0].mxu0
    %v462 = vpop.f32.mrb[0].mxu0
    %v463 = vpop.f32.mrb[0].mxu0
    %464 = vdwg.mxu0
    %v465 = vadd.f32 %v404, %v460
    %vm466 = vcmask 783360
    %v467 = vsel %vm466, %v465, 0.0
    %v468 = vrot.slane %v467, 4
    %v469 = vadd.f32 %v467, %v468
    %v470 = vrot.slane %v469, 2
    %v471 = vadd.f32 %v469, %v470
    %v472 = vrot.slane %v471, 1
    %v473 = vadd.f32 %v471, %v472
    %v474 = vpack.c.bf16 %v473, %v473
    %v475 = vld [vmem:[#allocation6] sm:$0xf]
    %v476 = vld [vmem:[#allocation6 + $0x4] sm:$0xf]
    %v477 = vld [vmem:[#allocation6 + $0x8] sm:$0xf]
    %v478 = vld [vmem:[#allocation6 + $0xc] sm:$0xf]
    %v479 = vld [vmem:[#allocation6 + $0x10] sm:$0xf]
    %v480 = vld [vmem:[#allocation6 + $0x14] sm:$0xf]
    %v481 = vld [vmem:[#allocation6 + $0x18] sm:$0xf]
    %v482 = vld [vmem:[#allocation6 + $0x1c] sm:$0xf]
    %v483 = vld [vmem:[#allocation6 + $0x20] sm:$0xf]
    %v484 = vld [vmem:[#allocation6 + $0x24] sm:$0xf]
    %v485 = vld [vmem:[#allocation6 + $0x28] sm:$0xf]
    %v486 = vld [vmem:[#allocation6 + $0x2c] sm:$0xf]
    %v499 = vunpack.c.l.b16 %v475
    %v500 = vunpack.c.l.b16 %v476
    %v501 = vunpack.c.l.b16 %v477
    %v502 = vunpack.c.l.b16 %v478
    %v503 = vunpack.c.l.b16 %v479
    %v504 = vunpack.c.l.b16 %v480
    %v505 = vunpack.c.l.b16 %v481
    %v506 = vunpack.c.l.b16 %v482
    %v507 = vunpack.c.l.b16 %v483
    %v508 = vunpack.c.l.b16 %v484
    %v509 = vunpack.c.l.b16 %v485
    %v510 = vunpack.c.l.b16 %v486
    %v511 = vpack.c.b16 %v500, %v499
    %v512 = vpack.c.b16 %v502, %v501
    %v513 = vpack.c.b16 %v504, %v503
    %v514 = vpack.c.b16 %v506, %v505
    %v515 = vpack.c.b16 %v508, %v507
    %v516 = vpack.c.b16 %v510, %v509
    %vm523 = vcmask 785408
    %v525 = vsel %vm523, %v474, 0
    %527 = vmatprep.subr.bf16.mxu0 0
    %528 = vmatpush1.bf16.msra.mxu0 %v511
    %529 = vmatprep.subr.bf16.mxu0 0
    %530 = vmatpush1.bf16.msra.mxu0 %v512
    %531 = vmatprep.subr.bf16.mxu0 0
    %532 = vmatpush1.bf16.msra.mxu0 %v513
    %533 = vmatprep.subr.bf16.mxu0 0
    %534 = vmatpush1.bf16.msra.mxu0 %v514
    %535 = vmatprep.subr.bf16.mxu0 0
    %536 = vmatpush1.bf16.msra.mxu0 %v515
    %537 = vmatprep.subr.bf16.mxu0 0
    %538 = vmatpush1.bf16.msra.mxu0 %v516
    %539 = vmatprep.subr.bf16.mxu0 0
    %540 = vmatpush1.bf16.msra.mxu0 0
    %541 = vmatprep.subr.bf16.mxu0 0
    %542 = vmatpush1.bf16.msra.mxu0 0
    %543 = vmatprep.subr.bf16.mxu0 0
    %544 = vmatpush1.bf16.msra.mxu0 0
    %545 = vmatprep.subr.bf16.mxu0 0
    %546 = vmatpush1.bf16.msra.mxu0 0
    %547 = vmatprep.subr.bf16.mxu0 0
    %548 = vmatpush1.bf16.msra.mxu0 0
    %549 = vmatprep.subr.bf16.mxu0 0
    %550 = vmatpush1.bf16.msra.mxu0 0
    %551 = vmatprep.subr.bf16.mxu0 0
    %552 = vmatpush1.bf16.msra.mxu0 0
    %553 = vmatprep.subr.bf16.mxu0 0
    %554 = vmatpush1.bf16.msra.mxu0 0
    %555 = vmatprep.subr.bf16.mxu0 0
    %556 = vmatpush1.bf16.msra.mxu0 0
    %557 = vmatprep.subr.bf16.mxu0 0
    %558 = vmatpush1.bf16.msra.mxu0 0
    %559 = vmatprep.mubr.bf16.mxu0 0
    %560 = vmatmul.mubr.bf16.gmra.mrb[0].mxu0 %v525
    %v561 = vpop.f32.mrb[0].mxu0
    %v562 = vadd.f32 0.0, %v561
    %v563 = vpop.f32.mrb[0].mxu0
    %v564 = vpop.f32.mrb[0].mxu0
    %v565 = vpop.f32.mrb[0].mxu0
    %566 = vdwg.mxu0
    %v567 = vmul.f32 %v562, 0.055555556
    %v568 = vlaneseq
    %v569 = vshrl.u32 %v568, 7
    %v570 = vsub.s32 0, %v569
    %v571 = vrot.slane %v567, %v570
    %v572 = vsub.f32 %v465, %v571
    %v573 = vmul.f32 %v572, %v572
    %v574 = vsel %vm466, %v573, 0.0
    %v575 = vrot.slane %v574, 4
    %v576 = vadd.f32 %v574, %v575
    %v577 = vrot.slane %v576, 2
    %v578 = vadd.f32 %v576, %v577
    %v579 = vrot.slane %v578, 1
    %v580 = vadd.f32 %v578, %v579
    %v581 = vpack.c.bf16 %v580, %v580
    %v583 = vsel %vm523, %v581, 0
    %585 = vmatprep.subr.bf16.mxu0 0
    %586 = vmatpush1.bf16.msra.mxu0 %v511
    %587 = vmatprep.subr.bf16.mxu0 0
    %588 = vmatpush1.bf16.msra.mxu0 %v512
    %589 = vmatprep.subr.bf16.mxu0 0
    %590 = vmatpush1.bf16.msra.mxu0 %v513
    %591 = vmatprep.subr.bf16.mxu0 0
    %592 = vmatpush1.bf16.msra.mxu0 %v514
    %593 = vmatprep.subr.bf16.mxu0 0
    %594 = vmatpush1.bf16.msra.mxu0 %v515
    %595 = vmatprep.subr.bf16.mxu0 0
    %596 = vmatpush1.bf16.msra.mxu0 %v516
    %597 = vmatprep.subr.bf16.mxu0 0
    %598 = vmatpush1.bf16.msra.mxu0 0
    %599 = vmatprep.subr.bf16.mxu0 0
    %600 = vmatpush1.bf16.msra.mxu0 0
    %601 = vmatprep.subr.bf16.mxu0 0
    %602 = vmatpush1.bf16.msra.mxu0 0
    %603 = vmatprep.subr.bf16.mxu0 0
    %604 = vmatpush1.bf16.msra.mxu0 0
    %605 = vmatprep.subr.bf16.mxu0 0
    %606 = vmatpush1.bf16.msra.mxu0 0
    %607 = vmatprep.subr.bf16.mxu0 0
    %608 = vmatpush1.bf16.msra.mxu0 0
    %609 = vmatprep.subr.bf16.mxu0 0
    %610 = vmatpush1.bf16.msra.mxu0 0
    %611 = vmatprep.subr.bf16.mxu0 0
    %612 = vmatpush1.bf16.msra.mxu0 0
    %613 = vmatprep.subr.bf16.mxu0 0
    %614 = vmatpush1.bf16.msra.mxu0 0
    %615 = vmatprep.subr.bf16.mxu0 0
    %616 = vmatpush1.bf16.msra.mxu0 0
    %617 = vmatprep.mubr.bf16.mxu0 0
    %618 = vmatmul.mubr.bf16.gmra.mrb[0].mxu0 %v583
    %v619 = vpop.f32.mrb[0].mxu0
    %v620 = vadd.f32 0.0, %v619
    %v621 = vpop.f32.mrb[0].mxu0
    %v622 = vpop.f32.mrb[0].mxu0
    %v623 = vpop.f32.mrb[0].mxu0
    %624 = vdwg.mxu0
    %v625 = vmul.f32 %v620, 0.055555556
    %v626 = vld [vmem:[#allocation7] sm:$0x1]
    %v627 = vadd.f32 %v625, 1e-05
    %v628 = vrsqrt.pop %v627
    %v629 = vmul.f32 %v626, %v628
    %v631 = vlaneseq
    %v632 = vshrl.u32 %v631, 7
    %v633 = vsub.s32 0, %v632
    %v634 = vrot.slane %v629, %v633
    %v636 = vmul.f32 %v572, %v634
    %v637 = vld [vmem:[#allocation9] sm:$0x1]
    %v639 = vlaneseq
    %v640 = vshrl.u32 %v639, 7
    %v641 = vsub.s32 0, %v640
    %v642 = vrot.slane %v637, %v641
    %v644 = vadd.f32 %v636, %v642
    %v645 = vmax.f32 %v644, 0.0
    %v646 = vpack.c.bf16 %v645, %v645
    %v647 = vld [vmem:[%s6] sm:$0xff]
    %v648 = vld [vmem:[%s6 + $0x8] sm:$0xf]
    %v649 = vld [vmem:[%s6 + $0xc] sm:$0xff]
    %v650 = vld [vmem:[%s6 + $0x14] sm:$0xf]
    %v651 = vld [vmem:[%s6 + $0x18] sm:$0xff]
    %v652 = vld [vmem:[%s6 + $0x20] sm:$0xf]
    %v653 = vld [vmem:[%s6 + $0x24] sm:$0xff]
    %v654 = vld [vmem:[%s6 + $0x2c] sm:$0xf]
    %v655 = vld [vmem:[%s6 + $0x30] sm:$0xff]
    %v656 = vld [vmem:[%s6 + $0x38] sm:$0xf]
    %v657 = vld [vmem:[%s6 + $0x3c] sm:$0xff]
    %v658 = vld [vmem:[%s6 + $0x44] sm:$0xf]
    %v659 = vld [vmem:[%s6 + $0x48] sm:$0xff]
    %v660 = vld [vmem:[%s6 + $0x50] sm:$0xf]
    %v661 = vld [vmem:[%s6 + $0x54] sm:$0xff]
    %v662 = vld [vmem:[%s6 + $0x5c] sm:$0xf]
    %v663 = vld [vmem:[%s6 + $0x60] sm:$0xff]
    %v664 = vld [vmem:[%s6 + $0x68] sm:$0xf]
    %v665 = vld [vmem:[%s6 + $0x6c] sm:$0xff]
    %v666 = vld [vmem:[%s6 + $0x74] sm:$0xf]
    %v667 = vld [vmem:[%s6 + $0x78] sm:$0xff]
    %v668 = vld [vmem:[%s6 + $0x80] sm:$0xf]
    %v669 = vld [vmem:[%s6 + $0x84] sm:$0xff]
    %v670 = vld [vmem:[%s6 + $0x8c] sm:$0xf]
    %v695 = vunpack.c.l.b16 %v647
    %v696 = vunpack.c.h.b16 %v647
    %v697 = vunpack.c.l.b16 %v648
    %v698 = vunpack.c.l.b16 %v649
    %v699 = vunpack.c.h.b16 %v649
    %v700 = vunpack.c.l.b16 %v650
    %v701 = vunpack.c.l.b16 %v651
    %v702 = vunpack.c.h.b16 %v651
    %v703 = vunpack.c.l.b16 %v652
    %v704 = vunpack.c.l.b16 %v653
    %v705 = vunpack.c.h.b16 %v653
    %v706 = vunpack.c.l.b16 %v654
    %v707 = vunpack.c.l.b16 %v655
    %v708 = vunpack.c.h.b16 %v655
    %v709 = vunpack.c.l.b16 %v656
    %v710 = vunpack.c.l.b16 %v657
    %v711 = vunpack.c.h.b16 %v657
    %v712 = vunpack.c.l.b16 %v658
    %v713 = vunpack.c.l.b16 %v659
    %v714 = vunpack.c.h.b16 %v659
    %v715 = vunpack.c.l.b16 %v660
    %v716 = vunpack.c.l.b16 %v661
    %v717 = vunpack.c.h.b16 %v661
    %v718 = vunpack.c.l.b16 %v662
    %v719 = vunpack.c.l.b16 %v663
    %v720 = vunpack.c.h.b16 %v663
    %v721 = vunpack.c.l.b16 %v664
    %v722 = vunpack.c.l.b16 %v665
    %v723 = vunpack.c.h.b16 %v665
    %v724 = vunpack.c.l.b16 %v666
    %v725 = vunpack.c.l.b16 %v667
    %v726 = vunpack.c.h.b16 %v667
    %v727 = vunpack.c.l.b16 %v668
    %v728 = vunpack.c.l.b16 %v669
    %v729 = vunpack.c.h.b16 %v669
    %v730 = vunpack.c.l.b16 %v670
    %v731 = vpack.c.b16 %v698, %v695
    %v732 = vpack.c.b16 %v699, %v696
    %v733 = vpack.c.b16 %v700, %v697
    %v734 = vpack.c.b16 %v704, %v701
    %v735 = vpack.c.b16 %v705, %v702
    %v736 = vpack.c.b16 %v706, %v703
    %v737 = vpack.c.b16 %v710, %v707
    %v738 = vpack.c.b16 %v711, %v708
    %v739 = vpack.c.b16 %v712, %v709
    %v740 = vpack.c.b16 %v716, %v713
    %v741 = vpack.c.b16 %v717, %v714
    %v742 = vpack.c.b16 %v718, %v715
    %v743 = vpack.c.b16 %v722, %v719
    %v744 = vpack.c.b16 %v723, %v720
    %v745 = vpack.c.b16 %v724, %v721
    %v746 = vpack.c.b16 %v728, %v725
    %v747 = vpack.c.b16 %v729, %v726
    %v748 = vpack.c.b16 %v730, %v727
    %v768 = vsel %vm523, %v646, 0
    %770 = vmatprep.subr.bf16.mxu0 %v732
    %771 = vmatpush1.bf16.msra.mxu0 %v731
    %772 = vmatprep.subr.bf16.mxu0 %v735
    %773 = vmatpush1.bf16.msra.mxu0 %v734
    %774 = vmatprep.subr.bf16.mxu0 %v738
    %775 = vmatpush1.bf16.msra.mxu0 %v737
    %776 = vmatprep.subr.bf16.mxu0 %v741
    %777 = vmatpush1.bf16.msra.mxu0 %v740
    %778 = vmatprep.subr.bf16.mxu0 %v744
    %779 = vmatpush1.bf16.msra.mxu0 %v743
    %780 = vmatprep.subr.bf16.mxu0 %v747
    %781 = vmatpush1.bf16.msra.mxu0 %v746
    %782 = vmatprep.subr.bf16.mxu0 0
    %783 = vmatpush1.bf16.msra.mxu0 0
    %784 = vmatprep.subr.bf16.mxu0 0
    %785 = vmatpush1.bf16.msra.mxu0 0
    %786 = vmatprep.subr.bf16.mxu0 0
    %787 = vmatpush1.bf16.msra.mxu0 0
    %788 = vmatprep.subr.bf16.mxu0 0
    %789 = vmatpush1.bf16.msra.mxu0 0
    %790 = vmatprep.subr.bf16.mxu0 0
    %791 = vmatpush1.bf16.msra.mxu0 0
    %792 = vmatprep.subr.bf16.mxu0 0
    %793 = vmatpush1.bf16.msra.mxu0 0
    %794 = vmatprep.subr.bf16.mxu0 0
    %795 = vmatpush1.bf16.msra.mxu0 0
    %796 = vmatprep.subr.bf16.mxu0 0
    %797 = vmatpush1.bf16.msra.mxu0 0
    %798 = vmatprep.subr.bf16.mxu0 0
    %799 = vmatpush1.bf16.msra.mxu0 0
    %800 = vmatprep.subr.bf16.mxu0 0
    %801 = vmatpush1.bf16.msra.mxu0 0
    %802 = vmatprep.mubr.bf16.mxu0 0
    %803 = vmatmul.mubr.bf16.gmra.mrb[0].mxu0 %v768
    %v804 = vpop.f32.mrb[0].mxu0
    %v805 = vadd.f32 0.0, %v804
    %v806 = vpop.f32.mrb[0].mxu0
    %v807 = vadd.f32 0.0, %v806
    %v808 = vpop.f32.mrb[0].mxu0
    %v809 = vpop.f32.mrb[0].mxu0
    %810 = vdwg.mxu0
    %811 = vmatprep.subr.bf16.mxu0 0
    %812 = vmatpush1.bf16.msra.mxu0 %v733
    %813 = vmatprep.subr.bf16.mxu0 0
    %814 = vmatpush1.bf16.msra.mxu0 %v736
    %815 = vmatprep.subr.bf16.mxu0 0
    %816 = vmatpush1.bf16.msra.mxu0 %v739
    %817 = vmatprep.subr.bf16.mxu0 0
    %818 = vmatpush1.bf16.msra.mxu0 %v742
    %819 = vmatprep.subr.bf16.mxu0 0
    %820 = vmatpush1.bf16.msra.mxu0 %v745
    %821 = vmatprep.subr.bf16.mxu0 0
    %822 = vmatpush1.bf16.msra.mxu0 %v748
    %823 = vmatprep.subr.bf16.mxu0 0
    %824 = vmatpush1.bf16.msra.mxu0 0
    %825 = vmatprep.subr.bf16.mxu0 0
    %826 = vmatpush1.bf16.msra.mxu0 0
    %827 = vmatprep.subr.bf16.mxu0 0
    %828 = vmatpush1.bf16.msra.mxu0 0
    %829 = vmatprep.subr.bf16.mxu0 0
    %830 = vmatpush1.bf16.msra.mxu0 0
    %831 = vmatprep.subr.bf16.mxu0 0
    %832 = vmatpush1.bf16.msra.mxu0 0
    %833 = vmatprep.subr.bf16.mxu0 0
    %834 = vmatpush1.bf16.msra.mxu0 0
    %835 = vmatprep.subr.bf16.mxu0 0
    %836 = vmatpush1.bf16.msra.mxu0 0
    %837 = vmatprep.subr.bf16.mxu0 0
    %838 = vmatpush1.bf16.msra.mxu0 0
    %839 = vmatprep.subr.bf16.mxu0 0
    %840 = vmatpush1.bf16.msra.mxu0 0
    %841 = vmatprep.subr.bf16.mxu0 0
    %842 = vmatpush1.bf16.msra.mxu0 0
    %843 = vmatprep.mubr.bf16.mxu0 0
    %844 = vmatmul.mubr.bf16.gmra.mrb[0].mxu0 %v768
    %v845 = vpop.f32.mrb[0].mxu0
    %v846 = vadd.f32 0.0, %v845
    %v847 = vpop.f32.mrb[0].mxu0
    %v848 = vpop.f32.mrb[0].mxu0
    %v849 = vpop.f32.mrb[0].mxu0
    %850 = vdwg.mxu0
    %v851 = vpack.c.bf16 %v805, %v805
    %v852 = vld [vmem:[%s7] sm:$0xf]
    %v853 = vld [vmem:[%s7 + $0x4] sm:$0x3]
    %v854 = vpack.c.bf16 %v807, %v807
    %s855 = scalar_lea.vmem %s7, 8
    %v856 = vld [vmem:[%s855] sm:$0xf]
    %v857 = vld [vmem:[%s855 + $0x4] sm:$0x3]
    %v860 = vunpack.c.l.b16 %v856
    %v861 = vunpack.c.l.b16 %v857
    %v862 = vpack.c.b16 %v861, %v860
    %865 = vrot.lane.b32.xlu0 %v851, 32
    %v866 = vpop.permute.xlu0 %865
    %867 = vrot.lane.b32.xlu0 %v854, 32
    %v868 = vpop.permute.xlu0 %867
    %v869 = vsel %vm313, %v866, %v868
    %vm870 = vcmask 48128
    %v872 = vsel %vm870, %v862, 0
    %vm874 = vcmask 1042432
    %v876 = vsel %vm874, %v869, 0
    %878 = vmatprep.subr.bf16.mxu0 0
    %879 = vmatpush1.bf16.msra.mxu0 %v876
    %880 = vmatprep.subr.bf16.mxu0 0
    %881 = vmatpush1.bf16.msra.mxu0 0
    %882 = vmatprep.subr.bf16.mxu0 0
    %883 = vmatpush1.bf16.msra.mxu0 0
    %884 = vmatprep.subr.bf16.mxu0 0
    %885 = vmatpush1.bf16.msra.mxu0 0
    %886 = vmatprep.subr.bf16.mxu0 0
    %887 = vmatpush1.bf16.msra.mxu0 0
    %888 = vmatprep.subr.bf16.mxu0 0
    %889 = vmatpush1.bf16.msra.mxu0 0
    %890 = vmatprep.subr.bf16.mxu0 0
    %891 = vmatpush1.bf16.msra.mxu0 0
    %892 = vmatprep.subr.bf16.mxu0 0
    %893 = vmatpush1.bf16.msra.mxu0 0
    %894 = vmatprep.subr.bf16.mxu0 0
    %895 = vmatpush1.bf16.msra.mxu0 0
    %896 = vmatprep.subr.bf16.mxu0 0
    %897 = vmatpush1.bf16.msra.mxu0 0
    %898 = vmatprep.subr.bf16.mxu0 0
    %899 = vmatpush1.bf16.msra.mxu0 0
    %900 = vmatprep.subr.bf16.mxu0 0
    %901 = vmatpush1.bf16.msra.mxu0 0
    %902 = vmatprep.subr.bf16.mxu0 0
    %903 = vmatpush1.bf16.msra.mxu0 0
    %904 = vmatprep.subr.bf16.mxu0 0
    %905 = vmatpush1.bf16.msra.mxu0 0
    %906 = vmatprep.subr.bf16.mxu0 0
    %907 = vmatpush1.bf16.msra.mxu0 0
    %908 = vmatprep.subr.bf16.mxu0 0
    %909 = vmatpush1.bf16.msra.mxu0 0
    %910 = vmatprep.mubr.bf16.mxu0 0
    %911 = vmatmul.mubr.bf16.gmra.mrb[0].mxu0 %v872
    %v912 = vpop.f32.mrb[0].mxu0
    %v913 = vadd.f32 0.0, %v912
    %v914 = vpop.f32.mrb[0].mxu0
    %v915 = vpop.f32.mrb[0].mxu0
    %v916 = vadd.f32 0.0, %v915
    %v917 = vpop.f32.mrb[0].mxu0
    %918 = vdwg.mxu0
    %v921 = vunpack.c.l.b16 %v852
    %v922 = vunpack.c.l.b16 %v853
    %v923 = vpack.c.b16 %v922, %v921
    %v925 = vsel %vm870, %v923, 0
    %v928 = vsel %vm874, %v851, 0
    %930 = vmatprep.subr.bf16.mxu0 0
    %931 = vmatpush1.bf16.msra.mxu0 %v928
    %932 = vmatprep.subr.bf16.mxu0 0
    %933 = vmatpush1.bf16.msra.mxu0 0
    %934 = vmatprep.subr.bf16.mxu0 0
    %935 = vmatpush1.bf16.msra.mxu0 0
    %936 = vmatprep.subr.bf16.mxu0 0
    %937 = vmatpush1.bf16.msra.mxu0 0
    %938 = vmatprep.subr.bf16.mxu0 0
    %939 = vmatpush1.bf16.msra.mxu0 0
    %940 = vmatprep.subr.bf16.mxu0 0
    %941 = vmatpush1.bf16.msra.mxu0 0
    %942 = vmatprep.subr.bf16.mxu0 0
    %943 = vmatpush1.bf16.msra.mxu0 0
    %944 = vmatprep.subr.bf16.mxu0 0
    %945 = vmatpush1.bf16.msra.mxu0 0
    %946 = vmatprep.subr.bf16.mxu0 0
    %947 = vmatpush1.bf16.msra.mxu0 0
    %948 = vmatprep.subr.bf16.mxu0 0
    %949 = vmatpush1.bf16.msra.mxu0 0
    %950 = vmatprep.subr.bf16.mxu0 0
    %951 = vmatpush1.bf16.msra.mxu0 0
    %952 = vmatprep.subr.bf16.mxu0 0
    %953 = vmatpush1.bf16.msra.mxu0 0
    %954 = vmatprep.subr.bf16.mxu0 0
    %955 = vmatpush1.bf16.msra.mxu0 0
    %956 = vmatprep.subr.bf16.mxu0 0
    %957 = vmatpush1.bf16.msra.mxu0 0
    %958 = vmatprep.subr.bf16.mxu0 0
    %959 = vmatpush1.bf16.msra.mxu0 0
    %960 = vmatprep.subr.bf16.mxu0 0
    %961 = vmatpush1.bf16.msra.mxu0 0
    %962 = vmatprep.mubr.bf16.mxu0 0
    %963 = vmatmul.mubr.bf16.gmra.mrb[0].mxu0 %v925
    %v964 = vpop.f32.mrb[0].mxu0
    %v965 = vadd.f32 %v913, %v964
    %v966 = vpop.f32.mrb[0].mxu0
    %v967 = vpop.f32.mrb[0].mxu0
    %v968 = vadd.f32 %v916, %v967
    %v969 = vpop.f32.mrb[0].mxu0
    %970 = vdwg.mxu0
    %v971 = vpack.c.bf16 %v846, %v846
    %s972 = scalar_lea.vmem %s7, 16
    %v973 = vld [vmem:[%s972] sm:$0xf]
    %v974 = vld [vmem:[%s972 + $0x4] sm:$0x3]
    %v977 = vunpack.c.l.b16 %v973
    %v978 = vunpack.c.l.b16 %v974
    %v979 = vpack.c.b16 %v978, %v977
    %981 = vrot.lane.b32.xlu0 %v854, 64
    %v982 = vpop.permute.xlu0 %981
    %983 = vrot.lane.b32.xlu0 %v971, 64
    %v984 = vpop.permute.xlu0 %983
    %v985 = vsel %vm417, %v982, %v984
    %v987 = vsel %vm870, %v979, 0
    %v990 = vsel %vm874, %v985, 0
    %992 = vmatprep.subr.bf16.mxu0 0
    %993 = vmatpush1.bf16.msra.mxu0 %v990
    %994 = vmatprep.subr.bf16.mxu0 0
    %995 = vmatpush1.bf16.msra.mxu0 0
    %996 = vmatprep.subr.bf16.mxu0 0
    %997 = vmatpush1.bf16.msra.mxu0 0
    %998 = vmatprep.subr.bf16.mxu0 0
    %999 = vmatpush1.bf16.msra.mxu0 0
    %1000 = vmatprep.subr.bf16.mxu0 0
    %1001 = vmatpush1.bf16.msra.mxu0 0
    %1002 = vmatprep.subr.bf16.mxu0 0
    %1003 = vmatpush1.bf16.msra.mxu0 0
    %1004 = vmatprep.subr.bf16.mxu0 0
    %1005 = vmatpush1.bf16.msra.mxu0 0
    %1006 = vmatprep.subr.bf16.mxu0 0
    %1007 = vmatpush1.bf16.msra.mxu0 0
    %1008 = vmatprep.subr.bf16.mxu0 0
    %1009 = vmatpush1.bf16.msra.mxu0 0
    %1010 = vmatprep.subr.bf16.mxu0 0
    %1011 = vmatpush1.bf16.msra.mxu0 0
    %1012 = vmatprep.subr.bf16.mxu0 0
    %1013 = vmatpush1.bf16.msra.mxu0 0
    %1014 = vmatprep.subr.bf16.mxu0 0
    %1015 = vmatpush1.bf16.msra.mxu0 0
    %1016 = vmatprep.subr.bf16.mxu0 0
    %1017 = vmatpush1.bf16.msra.mxu0 0
    %1018 = vmatprep.subr.bf16.mxu0 0
    %1019 = vmatpush1.bf16.msra.mxu0 0
    %1020 = vmatprep.subr.bf16.mxu0 0
    %1021 = vmatpush1.bf16.msra.mxu0 0
    %1022 = vmatprep.subr.bf16.mxu0 0
    %1023 = vmatpush1.bf16.msra.mxu0 0
    %1024 = vmatprep.mubr.bf16.mxu0 0
    %1025 = vmatmul.mubr.bf16.gmra.mrb[0].mxu0 %v987
    %v1026 = vpop.f32.mrb[0].mxu0
    %v1027 = vadd.f32 0.0, %v1026
    %v1028 = vpop.f32.mrb[0].mxu0
    %v1029 = vpop.f32.mrb[0].mxu0
    %v1030 = vadd.f32 0.0, %v1029
    %v1031 = vpop.f32.mrb[0].mxu0
    %1032 = vdwg.mxu0
    %v1033 = vadd.f32 %v965, %v1027
    %v1034 = vadd.f32 %v968, %v1030
    %s1035 = scalar_lea.vmem %s7, 24
    %v1036 = vld [vmem:[%s1035] sm:$0xf]
    %v1037 = vld [vmem:[%s1035 + $0x4] sm:$0x3]
    %v1040 = vunpack.c.l.b16 %v1036
    %v1041 = vunpack.c.l.b16 %v1037
    %v1042 = vpack.c.b16 %v1041, %v1040
    %1043 = vrot.lane.b32.xlu0 %v971, 96
    %v1044 = vpop.permute.xlu0 %1043
    %v1046 = vsel %vm870, %v1042, 0
    %v1049 = vsel %vm874, %v1044, 0
    %1051 = vmatprep.subr.bf16.mxu0 0
    %1052 = vmatpush1.bf16.msra.mxu0 %v1049
    %1053 = vmatprep.subr.bf16.mxu0 0
    %1054 = vmatpush1.bf16.msra.mxu0 0
    %1055 = vmatprep.subr.bf16.mxu0 0
    %1056 = vmatpush1.bf16.msra.mxu0 0
    %1057 = vmatprep.subr.bf16.mxu0 0
    %1058 = vmatpush1.bf16.msra.mxu0 0
    %1059 = vmatprep.subr.bf16.mxu0 0
    %1060 = vmatpush1.bf16.msra.mxu0 0
    %1061 = vmatprep.subr.bf16.mxu0 0
    %1062 = vmatpush1.bf16.msra.mxu0 0
    %1063 = vmatprep.subr.bf16.mxu0 0
    %1064 = vmatpush1.bf16.msra.mxu0 0
    %1065 = vmatprep.subr.bf16.mxu0 0
    %1066 = vmatpush1.bf16.msra.mxu0 0
    %1067 = vmatprep.subr.bf16.mxu0 0
    %1068 = vmatpush1.bf16.msra.mxu0 0
    %1069 = vmatprep.subr.bf16.mxu0 0
    %1070 = vmatpush1.bf16.msra.mxu0 0
    %1071 = vmatprep.subr.bf16.mxu0 0
    %1072 = vmatpush1.bf16.msra.mxu0 0
    %1073 = vmatprep.subr.bf16.mxu0 0
    %1074 = vmatpush1.bf16.msra.mxu0 0
    %1075 = vmatprep.subr.bf16.mxu0 0
    %1076 = vmatpush1.bf16.msra.mxu0 0
    %1077 = vmatprep.subr.bf16.mxu0 0
    %1078 = vmatpush1.bf16.msra.mxu0 0
    %1079 = vmatprep.subr.bf16.mxu0 0
    %1080 = vmatpush1.bf16.msra.mxu0 0
    %1081 = vmatprep.subr.bf16.mxu0 0
    %1082 = vmatpush1.bf16.msra.mxu0 0
    %1083 = vmatprep.mubr.bf16.mxu0 0
    %1084 = vmatmul.mubr.bf16.gmra.mrb[0].mxu0 %v1046
    %v1085 = vpop.f32.mrb[0].mxu0
    %v1086 = vadd.f32 0.0, %v1085
    %v1087 = vpop.f32.mrb[0].mxu0
    %v1088 = vpop.f32.mrb[0].mxu0
    %v1089 = vadd.f32 0.0, %v1088
    %v1090 = vpop.f32.mrb[0].mxu0
    %1091 = vdwg.mxu0
    %v1092 = vadd.f32 %v1033, %v1086
    %v1093 = vadd.f32 %v1034, %v1089
    %v1094 = vsel %vm523, %v1092, 0.0
    %vm1095 = vcmask 781312
    %v1096 = vsel %vm1095, %v1093, 0.0
    %v1097 = vadd.f32 %v1094, %v1096
    %v1098 = vrot.slane %v1097, 4
    %v1099 = vadd.f32 %v1097, %v1098
    %v1100 = vrot.slane %v1099, 2
    %v1101 = vadd.f32 %v1099, %v1100
    %v1102 = vrot.slane %v1101, 1
    %v1103 = vadd.f32 %v1101, %v1102
    %v1104 = vpack.c.bf16 %v1103, %v1103
    %v1105 = vld [vmem:[#allocation10] sm:$0xf]
    %v1106 = vld [vmem:[#allocation10 + $0x4] sm:$0xf]
    %v1107 = vld [vmem:[#allocation10 + $0x8] sm:$0xf]
    %v1108 = vld [vmem:[#allocation10 + $0xc] sm:$0xf]
    %v1109 = vld [vmem:[#allocation10 + $0x10] sm:$0xf]
    %v1110 = vld [vmem:[#allocation10 + $0x14] sm:$0xf]
    %v1111 = vld [vmem:[#allocation10 + $0x18] sm:$0xf]
    %v1112 = vld [vmem:[#allocation10 + $0x1c] sm:$0xf]
    %v1113 = vld [vmem:[#allocation10 + $0x20] sm:$0xf]
    %v1114 = vld [vmem:[#allocation10 + $0x24] sm:$0xf]
    %v1115 = vld [vmem:[#allocation10 + $0x28] sm:$0xf]
    %v1116 = vld [vmem:[#allocation10 + $0x2c] sm:$0xf]
    %v1129 = vunpack.c.l.b16 %v1105
    %v1130 = vunpack.c.l.b16 %v1106
    %v1131 = vunpack.c.l.b16 %v1107
    %v1132 = vunpack.c.l.b16 %v1108
    %v1133 = vunpack.c.l.b16 %v1109
    %v1134 = vunpack.c.l.b16 %v1110
    %v1135 = vunpack.c.l.b16 %v1111
    %v1136 = vunpack.c.l.b16 %v1112
    %v1137 = vunpack.c.l.b16 %v1113
    %v1138 = vunpack.c.l.b16 %v1114
    %v1139 = vunpack.c.l.b16 %v1115
    %v1140 = vunpack.c.l.b16 %v1116
    %v1141 = vpack.c.b16 %v1130, %v1129
    %v1142 = vpack.c.b16 %v1132, %v1131
    %v1143 = vpack.c.b16 %v1134, %v1133
    %v1144 = vpack.c.b16 %v1136, %v1135
    %v1145 = vpack.c.b16 %v1138, %v1137
    %v1146 = vpack.c.b16 %v1140, %v1139
    %v1154 = vsel %vm523, %v1104, 0
    %1156 = vmatprep.subr.bf16.mxu0 0
    %1157 = vmatpush1.bf16.msra.mxu0 %v1141
    %1158 = vmatprep.subr.bf16.mxu0 0
    %1159 = vmatpush1.bf16.msra.mxu0 %v1142
    %1160 = vmatprep.subr.bf16.mxu0 0
    %1161 = vmatpush1.bf16.msra.mxu0 %v1143
    %1162 = vmatprep.subr.bf16.mxu0 0
    %1163 = vmatpush1.bf16.msra.mxu0 %v1144
    %1164 = vmatprep.subr.bf16.mxu0 0
    %1165 = vmatpush1.bf16.msra.mxu0 %v1145
    %1166 = vmatprep.subr.bf16.mxu0 0
    %1167 = vmatpush1.bf16.msra.mxu0 %v1146
    %1168 = vmatprep.subr.bf16.mxu0 0
    %1169 = vmatpush1.bf16.msra.mxu0 0
    %1170 = vmatprep.subr.bf16.mxu0 0
    %1171 = vmatpush1.bf16.msra.mxu0 0
    %1172 = vmatprep.subr.bf16.mxu0 0
    %1173 = vmatpush1.bf16.msra.mxu0 0
    %1174 = vmatprep.subr.bf16.mxu0 0
    %1175 = vmatpush1.bf16.msra.mxu0 0
    %1176 = vmatprep.subr.bf16.mxu0 0
    %1177 = vmatpush1.bf16.msra.mxu0 0
    %1178 = vmatprep.subr.bf16.mxu0 0
    %1179 = vmatpush1.bf16.msra.mxu0 0
    %1180 = vmatprep.subr.bf16.mxu0 0
    %1181 = vmatpush1.bf16.msra.mxu0 0
    %1182 = vmatprep.subr.bf16.mxu0 0
    %1183 = vmatpush1.bf16.msra.mxu0 0
    %1184 = vmatprep.subr.bf16.mxu0 0
    %1185 = vmatpush1.bf16.msra.mxu0 0
    %1186 = vmatprep.subr.bf16.mxu0 0
    %1187 = vmatpush1.bf16.msra.mxu0 0
    %1188 = vmatprep.mubr.bf16.mxu0 0
    %1189 = vmatmul.mubr.bf16.gmra.mrb[0].mxu0 %v1154
    %v1190 = vpop.f32.mrb[0].mxu0
    %v1191 = vadd.f32 0.0, %v1190
    %v1192 = vpop.f32.mrb[0].mxu0
    %v1193 = vpop.f32.mrb[0].mxu0
    %v1194 = vpop.f32.mrb[0].mxu0
    %1195 = vdwg.mxu0
    %v1196 = vmul.f32 %v1191, 0.013888889
    %v1197 = vlaneseq
    %v1198 = vshrl.u32 %v1197, 7
    %v1199 = vsub.s32 0, %v1198
    %v1200 = vrot.slane %v1196, %v1199
    %v1201 = vsub.f32 %v1092, %v1200
    %v1202 = vsub.f32 %v1093, %v1200
    %v1203 = vmul.f32 %v1201, %v1201
    %v1204 = vmul.f32 %v1202, %v1202
    %v1205 = vsel %vm523, %v1203, 0.0
    %v1206 = vsel %vm1095, %v1204, 0.0
    %v1207 = vadd.f32 %v1205, %v1206
    %v1208 = vrot.slane %v1207, 4
    %v1209 = vadd.f32 %v1207, %v1208
    %v1210 = vrot.slane %v1209, 2
    %v1211 = vadd.f32 %v1209, %v1210
    %v1212 = vrot.slane %v1211, 1
    %v1213 = vadd.f32 %v1211, %v1212
    %v1214 = vpack.c.bf16 %v1213, %v1213
    %v1216 = vsel %vm523, %v1214, 0
    %1218 = vmatprep.subr.bf16.mxu0 0
    %1219 = vmatpush1.bf16.msra.mxu0 %v1141
    %1220 = vmatprep.subr.bf16.mxu0 0
    %1221 = vmatpush1.bf16.msra.mxu0 %v1142
    %1222 = vmatprep.subr.bf16.mxu0 0
    %1223 = vmatpush1.bf16.msra.mxu0 %v1143
    %1224 = vmatprep.subr.bf16.mxu0 0
    %1225 = vmatpush1.bf16.msra.mxu0 %v1144
    %1226 = vmatprep.subr.bf16.mxu0 0
    %1227 = vmatpush1.bf16.msra.mxu0 %v1145
    %1228 = vmatprep.subr.bf16.mxu0 0
    %1229 = vmatpush1.bf16.msra.mxu0 %v1146
    %1230 = vmatprep.subr.bf16.mxu0 0
    %1231 = vmatpush1.bf16.msra.mxu0 0
    %1232 = vmatprep.subr.bf16.mxu0 0
    %1233 = vmatpush1.bf16.msra.mxu0 0
    %1234 = vmatprep.subr.bf16.mxu0 0
    %1235 = vmatpush1.bf16.msra.mxu0 0
    %1236 = vmatprep.subr.bf16.mxu0 0
    %1237 = vmatpush1.bf16.msra.mxu0 0
    %1238 = vmatprep.subr.bf16.mxu0 0
    %1239 = vmatpush1.bf16.msra.mxu0 0
    %1240 = vmatprep.subr.bf16.mxu0 0
    %1241 = vmatpush1.bf16.msra.mxu0 0
    %1242 = vmatprep.subr.bf16.mxu0 0
    %1243 = vmatpush1.bf16.msra.mxu0 0
    %1244 = vmatprep.subr.bf16.mxu0 0
    %1245 = vmatpush1.bf16.msra.mxu0 0
    %1246 = vmatprep.subr.bf16.mxu0 0
    %1247 = vmatpush1.bf16.msra.mxu0 0
    %1248 = vmatprep.subr.bf16.mxu0 0
    %1249 = vmatpush1.bf16.msra.mxu0 0
    %1250 = vmatprep.mubr.bf16.mxu0 0
    %1251 = vmatmul.mubr.bf16.gmra.mrb[0].mxu0 %v1216
    %v1252 = vpop.f32.mrb[0].mxu0
    %v1253 = vadd.f32 0.0, %v1252
    %v1254 = vpop.f32.mrb[0].mxu0
    %v1255 = vpop.f32.mrb[0].mxu0
    %v1256 = vpop.f32.mrb[0].mxu0
    %1257 = vdwg.mxu0
    %v1258 = vmul.f32 %v1253, 0.013888889
    %v1259 = vld [vmem:[#allocation12] sm:$0x1]
    %v1260 = vadd.f32 %v1258, 1e-05
    %v1261 = vrsqrt.pop %v1260
    %v1262 = vmul.f32 %v1259, %v1261
    %v1264 = vlaneseq
    %v1265 = vshrl.u32 %v1264, 7
    %v1266 = vsub.s32 0, %v1265
    %v1267 = vrot.slane %v1262, %v1266
    %v1269 = vmul.f32 %v1201, %v1267
    %v1270 = vmul.f32 %v1202, %v1267
    %v1271 = vld [vmem:[#allocation13] sm:$0x1]
    %v1273 = vlaneseq
    %v1274 = vshrl.u32 %v1273, 7
    %v1275 = vsub.s32 0, %v1274
    %v1276 = vrot.slane %v1271, %v1275
    %v1278 = vadd.f32 %v1269, %v1276
    %v1279 = vadd.f32 %v1270, %v1276
    %v1280 = vmax.f32 %v1278, 0.0
    %v1281 = vmax.f32 %v1279, 0.0
    %v1282 = vpack.c.bf16 %v1281, %v1280
    %v1283 = vld [vmem:[%s11] sm:$0xff]
    %v1284 = vld [vmem:[%s11 + $0x8] sm:$0xf]
    %v1285 = vld [vmem:[%s11 + $0xc] sm:$0xff]
    %v1286 = vld [vmem:[%s11 + $0x14] sm:$0xf]
    %v1287 = vld [vmem:[%s11 + $0x18] sm:$0xff]
    %v1288 = vld [vmem:[%s11 + $0x20] sm:$0xf]
    %v1289 = vld [vmem:[%s11 + $0x24] sm:$0xff]
    %v1290 = vld [vmem:[%s11 + $0x2c] sm:$0xf]
    %v1291 = vld [vmem:[%s11 + $0x30] sm:$0xff]
    %v1292 = vld [vmem:[%s11 + $0x38] sm:$0xf]
    %v1293 = vld [vmem:[%s11 + $0x3c] sm:$0xff]
    %v1294 = vld [vmem:[%s11 + $0x44] sm:$0xf]
    %v1295 = vld [vmem:[%s11 + $0x48] sm:$0xff]
    %v1296 = vld [vmem:[%s11 + $0x50] sm:$0xf]
    %v1297 = vld [vmem:[%s11 + $0x54] sm:$0xff]
    %v1298 = vld [vmem:[%s11 + $0x5c] sm:$0xf]
    %v1299 = vld [vmem:[%s11 + $0x60] sm:$0xff]
    %v1300 = vld [vmem:[%s11 + $0x68] sm:$0xf]
    %v1301 = vld [vmem:[%s11 + $0x6c] sm:$0xff]
    %v1302 = vld [vmem:[%s11 + $0x74] sm:$0xf]
    %v1303 = vld [vmem:[%s11 + $0x78] sm:$0xff]
    %v1304 = vld [vmem:[%s11 + $0x80] sm:$0xf]
    %v1305 = vld [vmem:[%s11 + $0x84] sm:$0xff]
    %v1306 = vld [vmem:[%s11 + $0x8c] sm:$0xf]
    %v1331 = vunpack.c.l.b16 %v1283
    %v1332 = vunpack.c.h.b16 %v1283
    %v1333 = vunpack.c.l.b16 %v1284
    %v1334 = vunpack.c.l.b16 %v1285
    %v1335 = vunpack.c.h.b16 %v1285
    %v1336 = vunpack.c.l.b16 %v1286
    %v1337 = vunpack.c.l.b16 %v1287
    %v1338 = vunpack.c.h.b16 %v1287
    %v1339 = vunpack.c.l.b16 %v1288
    %v1340 = vunpack.c.l.b16 %v1289
    %v1341 = vunpack.c.h.b16 %v1289
    %v1342 = vunpack.c.l.b16 %v1290
    %v1343 = vunpack.c.l.b16 %v1291
    %v1344 = vunpack.c.h.b16 %v1291
    %v1345 = vunpack.c.l.b16 %v1292
    %v1346 = vunpack.c.l.b16 %v1293
    %v1347 = vunpack.c.h.b16 %v1293
    %v1348 = vunpack.c.l.b16 %v1294
    %v1349 = vunpack.c.l.b16 %v1295
    %v1350 = vunpack.c.h.b16 %v1295
    %v1351 = vunpack.c.l.b16 %v1296
    %v1352 = vunpack.c.l.b16 %v1297
    %v1353 = vunpack.c.h.b16 %v1297
    %v1354 = vunpack.c.l.b16 %v1298
    %v1355 = vunpack.c.l.b16 %v1299
    %v1356 = vunpack.c.h.b16 %v1299
    %v1357 = vunpack.c.l.b16 %v1300
    %v1358 = vunpack.c.l.b16 %v1301
    %v1359 = vunpack.c.h.b16 %v1301
    %v1360 = vunpack.c.l.b16 %v1302
    %v1361 = vunpack.c.l.b16 %v1303
    %v1362 = vunpack.c.h.b16 %v1303
    %v1363 = vunpack.c.l.b16 %v1304
    %v1364 = vunpack.c.l.b16 %v1305
    %v1365 = vunpack.c.h.b16 %v1305
    %v1366 = vunpack.c.l.b16 %v1306
    %v1367 = vpack.c.b16 %v1334, %v1331
    %v1368 = vpack.c.b16 %v1335, %v1332
    %v1369 = vpack.c.b16 %v1336, %v1333
    %v1370 = vpack.c.b16 %v1340, %v1337
    %v1371 = vpack.c.b16 %v1341, %v1338
    %v1372 = vpack.c.b16 %v1342, %v1339
    %v1373 = vpack.c.b16 %v1346, %v1343
    %v1374 = vpack.c.b16 %v1347, %v1344
    %v1375 = vpack.c.b16 %v1348, %v1345
    %v1376 = vpack.c.b16 %v1352, %v1349
    %v1377 = vpack.c.b16 %v1353, %v1350
    %v1378 = vpack.c.b16 %v1354, %v1351
    %v1379 = vpack.c.b16 %v1358, %v1355
    %v1380 = vpack.c.b16 %v1359, %v1356
    %v1381 = vpack.c.b16 %v1360, %v1357
    %v1382 = vpack.c.b16 %v1364, %v1361
    %v1383 = vpack.c.b16 %v1365, %v1362
    %v1384 = vpack.c.b16 %v1366, %v1363
    %v1404 = vsel %vm523, %v1282, 0
    %1406 = vmatprep.subr.bf16.mxu0 %v1368
    %1407 = vmatpush1.bf16.msra.mxu0 %v1367
    %1408 = vmatprep.subr.bf16.mxu0 %v1371
    %1409 = vmatpush1.bf16.msra.mxu0 %v1370
    %1410 = vmatprep.subr.bf16.mxu0 %v1374
    %1411 = vmatpush1.bf16.msra.mxu0 %v1373
    %1412 = vmatprep.subr.bf16.mxu0 %v1377
    %1413 = vmatpush1.bf16.msra.mxu0 %v1376
    %1414 = vmatprep.subr.bf16.mxu0 %v1380
    %1415 = vmatpush1.bf16.msra.mxu0 %v1379
    %1416 = vmatprep.subr.bf16.mxu0 %v1383
    %1417 = vmatpush1.bf16.msra.mxu0 %v1382
    %1418 = vmatprep.subr.bf16.mxu0 0
    %1419 = vmatpush1.bf16.msra.mxu0 0
    %1420 = vmatprep.subr.bf16.mxu0 0
    %1421 = vmatpush1.bf16.msra.mxu0 0
    %1422 = vmatprep.subr.bf16.mxu0 0
    %1423 = vmatpush1.bf16.msra.mxu0 0
    %1424 = vmatprep.subr.bf16.mxu0 0
    %1425 = vmatpush1.bf16.msra.mxu0 0
    %1426 = vmatprep.subr.bf16.mxu0 0
    %1427 = vmatpush1.bf16.msra.mxu0 0
    %1428 = vmatprep.subr.bf16.mxu0 0
    %1429 = vmatpush1.bf16.msra.mxu0 0
    %1430 = vmatprep.subr.bf16.mxu0 0
    %1431 = vmatpush1.bf16.msra.mxu0 0
    %1432 = vmatprep.subr.bf16.mxu0 0
    %1433 = vmatpush1.bf16.msra.mxu0 0
    %1434 = vmatprep.subr.bf16.mxu0 0
    %1435 = vmatpush1.bf16.msra.mxu0 0
    %1436 = vmatprep.subr.bf16.mxu0 0
    %1437 = vmatpush1.bf16.msra.mxu0 0
    %1438 = vmatprep.mubr.bf16.mxu0 0
    %1439 = vmatmul.mubr.bf16.gmra.mrb[0].mxu0 %v1404
    %v1440 = vpop.f32.mrb[0].mxu0
    %v1441 = vadd.f32 0.0, %v1440
    %v1442 = vpop.f32.mrb[0].mxu0
    %v1443 = vadd.f32 0.0, %v1442
    %v1444 = vpop.f32.mrb[0].mxu0
    %v1445 = vadd.f32 0.0, %v1444
    %v1446 = vpop.f32.mrb[0].mxu0
    %v1447 = vadd.f32 0.0, %v1446
    %1448 = vdwg.mxu0
    %1449 = vmatprep.subr.bf16.mxu0 0
    %1450 = vmatpush1.bf16.msra.mxu0 %v1369
    %1451 = vmatprep.subr.bf16.mxu0 0
    %1452 = vmatpush1.bf16.msra.mxu0 %v1372
    %1453 = vmatprep.subr.bf16.mxu0 0
    %1454 = vmatpush1.bf16.msra.mxu0 %v1375
    %1455 = vmatprep.subr.bf16.mxu0 0
    %1456 = vmatpush1.bf16.msra.mxu0 %v1378
    %1457 = vmatprep.subr.bf16.mxu0 0
    %1458 = vmatpush1.bf16.msra.mxu0 %v1381
    %1459 = vmatprep.subr.bf16.mxu0 0
    %1460 = vmatpush1.bf16.msra.mxu0 %v1384
    %1461 = vmatprep.subr.bf16.mxu0 0
    %1462 = vmatpush1.bf16.msra.mxu0 0
    %1463 = vmatprep.subr.bf16.mxu0 0
    %1464 = vmatpush1.bf16.msra.mxu0 0
    %1465 = vmatprep.subr.bf16.mxu0 0
    %1466 = vmatpush1.bf16.msra.mxu0 0
    %1467 = vmatprep.subr.bf16.mxu0 0
    %1468 = vmatpush1.bf16.msra.mxu0 0
    %1469 = vmatprep.subr.bf16.mxu0 0
    %1470 = vmatpush1.bf16.msra.mxu0 0
    %1471 = vmatprep.subr.bf16.mxu0 0
    %1472 = vmatpush1.bf16.msra.mxu0 0
    %1473 = vmatprep.subr.bf16.mxu0 0
    %1474 = vmatpush1.bf16.msra.mxu0 0
    %1475 = vmatprep.subr.bf16.mxu0 0
    %1476 = vmatpush1.bf16.msra.mxu0 0
    %1477 = vmatprep.subr.bf16.mxu0 0
    %1478 = vmatpush1.bf16.msra.mxu0 0
    %1479 = vmatprep.subr.bf16.mxu0 0
    %1480 = vmatpush1.bf16.msra.mxu0 0
    %1481 = vmatprep.mubr.bf16.mxu0 0
    %1482 = vmatmul.mubr.bf16.gmra.mrb[0].mxu0 %v1404
    %v1483 = vpop.f32.mrb[0].mxu0
    %v1484 = vadd.f32 0.0, %v1483
    %v1485 = vpop.f32.mrb[0].mxu0
    %v1486 = vpop.f32.mrb[0].mxu0
    %v1487 = vadd.f32 0.0, %v1486
    %v1488 = vpop.f32.mrb[0].mxu0
    %1489 = vdwg.mxu0
    %v1490 = vpack.c.bf16 %v1445, %v1441
    %v1491 = vld [vmem:[%s12] sm:$0xf]
    %v1492 = vld [vmem:[%s12 + $0x4] sm:$0xf]
    %v1493 = vld [vmem:[%s12 + $0x8] sm:$0xf]
    %v1494 = vld [vmem:[%s12 + $0xc] sm:$0x1]
    %v1495 = vpack.c.bf16 %v1447, %v1443
    %s1496 = scalar_lea.vmem %s12, 16
    %v1497 = vld [vmem:[%s1496] sm:$0xf]
    %v1498 = vld [vmem:[%s1496 + $0x4] sm:$0xf]
    %v1499 = vld [vmem:[%s1496 + $0x8] sm:$0xf]
    %v1500 = vld [vmem:[%s1496 + $0xc] sm:$0x1]
    %v1505 = vunpack.c.l.b16 %v1497
    %v1506 = vunpack.c.l.b16 %v1498
    %v1507 = vunpack.c.l.b16 %v1499
    %v1508 = vunpack.c.l.b16 %v1500
    %v1509 = vpack.c.b16 %v1506, %v1505
    %v1510 = vpack.c.b16 %v1508, %v1507
    %1513 = vrot.lane.b32.xlu0 %v1490, 24
    %v1514 = vpop.permute.xlu0 %1513
    %1515 = vrot.lane.b32.xlu0 %v1495, 24
    %v1516 = vpop.permute.xlu0 %1515
    %vm1517 = vcmask 195584
    %v1518 = vsel %vm1517, %v1514, %v1516
    %vm1519 = vcmask 97280
    %v1521 = vsel %vm1519, %v1509, 0
    %v1524 = vsel %vm1519, %v1510, 0
    %vm1526 = vcmask 1045504
    %v1528 = vsel %vm1526, %v1518, 0
    %1530 = vmatprep.subr.bf16.mxu0 0
    %1531 = vmatpush1.bf16.msra.mxu0 %v1528
    %1532 = vmatprep.subr.bf16.mxu0 0
    %1533 = vmatpush1.bf16.msra.mxu0 0
    %1534 = vmatprep.subr.bf16.mxu0 0
    %1535 = vmatpush1.bf16.msra.mxu0 0
    %1536 = vmatprep.subr.bf16.mxu0 0
    %1537 = vmatpush1.bf16.msra.mxu0 0
    %1538 = vmatprep.subr.bf16.mxu0 0
    %1539 = vmatpush1.bf16.msra.mxu0 0
    %1540 = vmatprep.subr.bf16.mxu0 0
    %1541 = vmatpush1.bf16.msra.mxu0 0
    %1542 = vmatprep.subr.bf16.mxu0 0
    %1543 = vmatpush1.bf16.msra.mxu0 0
    %1544 = vmatprep.subr.bf16.mxu0 0
    %1545 = vmatpush1.bf16.msra.mxu0 0
    %1546 = vmatprep.subr.bf16.mxu0 0
    %1547 = vmatpush1.bf16.msra.mxu0 0
    %1548 = vmatprep.subr.bf16.mxu0 0
    %1549 = vmatpush1.bf16.msra.mxu0 0
    %1550 = vmatprep.subr.bf16.mxu0 0
    %1551 = vmatpush1.bf16.msra.mxu0 0
    %1552 = vmatprep.subr.bf16.mxu0 0
    %1553 = vmatpush1.bf16.msra.mxu0 0
    %1554 = vmatprep.subr.bf16.mxu0 0
    %1555 = vmatpush1.bf16.msra.mxu0 0
    %1556 = vmatprep.subr.bf16.mxu0 0
    %1557 = vmatpush1.bf16.msra.mxu0 0
    %1558 = vmatprep.subr.bf16.mxu0 0
    %1559 = vmatpush1.bf16.msra.mxu0 0
    %1560 = vmatprep.subr.bf16.mxu0 0
    %1561 = vmatpush1.bf16.msra.mxu0 0
    %1562 = vmatprep.mubr.bf16.mxu0 0
    %1563 = vmatmul.mubr.bf16.gmra.mrb[0].mxu0 %v1521
    %v1564 = vpop.f32.mrb[0].mxu0
    %v1565 = vadd.f32 0.0, %v1564
    %v1566 = vpop.f32.mrb[0].mxu0
    %v1567 = vpop.f32.mrb[0].mxu0
    %v1568 = vadd.f32 0.0, %v1567
    %v1569 = vpop.f32.mrb[0].mxu0
    %1570 = vmatprep.mubr.bf16.mxu0 0
    %1571 = vmatmul.mubr.bf16.gmra.mrb[0].mxu0 %v1524
    %v1572 = vpop.f32.mrb[0].mxu0
    %v1573 = vadd.f32 0.0, %v1572
    %v1574 = vpop.f32.mrb[0].mxu0
    %v1575 = vpop.f32.mrb[0].mxu0
    %v1576 = vadd.f32 0.0, %v1575
    %v1577 = vpop.f32.mrb[0].mxu0
    %1578 = vdwg.mxu0
    %v1583 = vunpack.c.l.b16 %v1491
    %v1584 = vunpack.c.l.b16 %v1492
    %v1585 = vunpack.c.l.b16 %v1493
    %v1586 = vunpack.c.l.b16 %v1494
    %v1587 = vpack.c.b16 %v1584, %v1583
    %v1588 = vpack.c.b16 %v1586, %v1585
    %v1590 = vsel %vm1519, %v1587, 0
    %v1593 = vsel %vm1519, %v1588, 0
    %v1596 = vsel %vm1526, %v1490, 0
    %1598 = vmatprep.subr.bf16.mxu0 0
    %1599 = vmatpush1.bf16.msra.mxu0 %v1596
    %1600 = vmatprep.subr.bf16.mxu0 0
    %1601 = vmatpush1.bf16.msra.mxu0 0
    %1602 = vmatprep.subr.bf16.mxu0 0
    %1603 = vmatpush1.bf16.msra.mxu0 0
    %1604 = vmatprep.subr.bf16.mxu0 0
    %1605 = vmatpush1.bf16.msra.mxu0 0
    %1606 = vmatprep.subr.bf16.mxu0 0
    %1607 = vmatpush1.bf16.msra.mxu0 0
    %1608 = vmatprep.subr.bf16.mxu0 0
    %1609 = vmatpush1.bf16.msra.mxu0 0
    %1610 = vmatprep.subr.bf16.mxu0 0
    %1611 = vmatpush1.bf16.msra.mxu0 0
    %1612 = vmatprep.subr.bf16.mxu0 0
    %1613 = vmatpush1.bf16.msra.mxu0 0
    %1614 = vmatprep.subr.bf16.mxu0 0
    %1615 = vmatpush1.bf16.msra.mxu0 0
    %1616 = vmatprep.subr.bf16.mxu0 0
    %1617 = vmatpush1.bf16.msra.mxu0 0
    %1618 = vmatprep.subr.bf16.mxu0 0
    %1619 = vmatpush1.bf16.msra.mxu0 0
    %1620 = vmatprep.subr.bf16.mxu0 0
    %1621 = vmatpush1.bf16.msra.mxu0 0
    %1622 = vmatprep.subr.bf16.mxu0 0
    %1623 = vmatpush1.bf16.msra.mxu0 0
    %1624 = vmatprep.subr.bf16.mxu0 0
    %1625 = vmatpush1.bf16.msra.mxu0 0
    %1626 = vmatprep.subr.bf16.mxu0 0
    %1627 = vmatpush1.bf16.msra.mxu0 0
    %1628 = vmatprep.subr.bf16.mxu0 0
    %1629 = vmatpush1.bf16.msra.mxu0 0
    %1630 = vmatprep.mubr.bf16.mxu0 0
    %1631 = vmatmul.mubr.bf16.gmra.mrb[0].mxu0 %v1590
    %v1632 = vpop.f32.mrb[0].mxu0
    %v1633 = vadd.f32 %v1565, %v1632
    %v1634 = vpop.f32.mrb[0].mxu0
    %v1635 = vpop.f32.mrb[0].mxu0
    %v1636 = vadd.f32 %v1568, %v1635
    %v1637 = vpop.f32.mrb[0].mxu0
    %1638 = vmatprep.mubr.bf16.mxu0 0
    %1639 = vmatmul.mubr.bf16.gmra.mrb[0].mxu0 %v1593
    %v1640 = vpop.f32.mrb[0].mxu0
    %v1641 = vadd.f32 %v1573, %v1640
    %v1642 = vpop.f32.mrb[0].mxu0
    %v1643 = vpop.f32.mrb[0].mxu0
    %v1644 = vadd.f32 %v1576, %v1643
    %v1645 = vpop.f32.mrb[0].mxu0
    %1646 = vdwg.mxu0
    %v1647 = vpack.c.bf16 %v1487, %v1484
    %s1648 = scalar_lea.vmem %s12, 32
    %v1649 = vld [vmem:[%s1648] sm:$0xf]
    %v1650 = vld [vmem:[%s1648 + $0x4] sm:$0xf]
    %v1651 = vld [vmem:[%s1648 + $0x8] sm:$0xf]
    %v1652 = vld [vmem:[%s1648 + $0xc] sm:$0x1]
    %v1657 = vunpack.c.l.b16 %v1649
    %v1658 = vunpack.c.l.b16 %v1650
    %v1659 = vunpack.c.l.b16 %v1651
    %v1660 = vunpack.c.l.b16 %v1652
    %v1661 = vpack.c.b16 %v1658, %v1657
    %v1662 = vpack.c.b16 %v1660, %v1659
    %1664 = vrot.lane.b32.xlu0 %v1495, 48
    %v1665 = vpop.permute.xlu0 %1664
    %1666 = vrot.lane.b32.xlu0 %v1647, 48
    %v1667 = vpop.permute.xlu0 %1666
    %vm1668 = vcmask 392192
    %v1669 = vsel %vm1668, %v1665, %v1667
    %v1671 = vsel %vm1519, %v1661, 0
    %v1674 = vsel %vm1519, %v1662, 0
    %v1677 = vsel %vm1526, %v1669, 0
    %1679 = vmatprep.subr.bf16.mxu0 0
    %1680 = vmatpush1.bf16.msra.mxu0 %v1677
    %1681 = vmatprep.subr.bf16.mxu0 0
    %1682 = vmatpush1.bf16.msra.mxu0 0
    %1683 = vmatprep.subr.bf16.mxu0 0
    %1684 = vmatpush1.bf16.msra.mxu0 0
    %1685 = vmatprep.subr.bf16.mxu0 0
    %1686 = vmatpush1.bf16.msra.mxu0 0
    %1687 = vmatprep.subr.bf16.mxu0 0
    %1688 = vmatpush1.bf16.msra.mxu0 0
    %1689 = vmatprep.subr.bf16.mxu0 0
    %1690 = vmatpush1.bf16.msra.mxu0 0
    %1691 = vmatprep.subr.bf16.mxu0 0
    %1692 = vmatpush1.bf16.msra.mxu0 0
    %1693 = vmatprep.subr.bf16.mxu0 0
    %1694 = vmatpush1.bf16.msra.mxu0 0
    %1695 = vmatprep.subr.bf16.mxu0 0
    %1696 = vmatpush1.bf16.msra.mxu0 0
    %1697 = vmatprep.subr.bf16.mxu0 0
    %1698 = vmatpush1.bf16.msra.mxu0 0
    %1699 = vmatprep.subr.bf16.mxu0 0
    %1700 = vmatpush1.bf16.msra.mxu0 0
    %1701 = vmatprep.subr.bf16.mxu0 0
    %1702 = vmatpush1.bf16.msra.mxu0 0
    %1703 = vmatprep.subr.bf16.mxu0 0
    %1704 = vmatpush1.bf16.msra.mxu0 0
    %1705 = vmatprep.subr.bf16.mxu0 0
    %1706 = vmatpush1.bf16.msra.mxu0 0
    %1707 = vmatprep.subr.bf16.mxu0 0
    %1708 = vmatpush1.bf16.msra.mxu0 0
    %1709 = vmatprep.subr.bf16.mxu0 0
    %1710 = vmatpush1.bf16.msra.mxu0 0
    %1711 = vmatprep.mubr.bf16.mxu0 0
    %1712 = vmatmul.mubr.bf16.gmra.mrb[0].mxu0 %v1671
    %v1713 = vpop.f32.mrb[0].mxu0
    %v1714 = vadd.f32 0.0, %v1713
    %v1715 = vpop.f32.mrb[0].mxu0
    %v1716 = vpop.f32.mrb[0].mxu0
    %v1717 = vadd.f32 0.0, %v1716
    %v1718 = vpop.f32.mrb[0].mxu0
    %1719 = vmatprep.mubr.bf16.mxu0 0
    %1720 = vmatmul.mubr.bf16.gmra.mrb[0].mxu0 %v1674
    %v1721 = vpop.f32.mrb[0].mxu0
    %v1722 = vadd.f32 0.0, %v1721
    %v1723 = vpop.f32.mrb[0].mxu0
    %v1724 = vpop.f32.mrb[0].mxu0
    %v1725 = vadd.f32 0.0, %v1724
    %v1726 = vpop.f32.mrb[0].mxu0
    %1727 = vdwg.mxu0
    %v1728 = vadd.f32 %v1633, %v1714
    %v1729 = vadd.f32 %v1636, %v1717
    %v1730 = vadd.f32 %v1641, %v1722
    %v1731 = vadd.f32 %v1644, %v1725
    %vm1732 = vcmask 850944
    %v1733 = vsel %vm1732, %v1728, 0.0
    %v1734 = vsel %vm1732, %v1729, 0.0
    %v1735 = vadd.f32 %v1733, %v1734
    %v1736 = vsel %vm1732, %v1730, 0.0
    %v1737 = vadd.f32 %v1735, %v1736
    %vm1738 = vcmask 844800
    %v1739 = vsel %vm1738, %v1731, 0.0
    %v1740 = vadd.f32 %v1737, %v1739
    %v1741 = vrot.slane %v1740, 4
    %v1742 = vadd.f32 %v1740, %v1741
    %v1743 = vrot.slane %v1742, 2
    %v1744 = vadd.f32 %v1742, %v1743
    %v1745 = vrot.slane %v1744, 1
    %v1746 = vadd.f32 %v1744, %v1745
    %v1747 = vpack.c.bf16 %v1746, %v1746
    %v1748 = vld [vmem:[%s13] sm:$0xf]
    %v1749 = vld [vmem:[%s13 + $0x4] sm:$0xf]
    %v1750 = vld [vmem:[%s13 + $0x8] sm:$0xf]
    %v1751 = vld [vmem:[%s13 + $0xc] sm:$0xf]
    %v1752 = vld [vmem:[%s13 + $0x10] sm:$0xf]
    %v1753 = vld [vmem:[%s13 + $0x14] sm:$0xf]
    %v1754 = vld [vmem:[%s13 + $0x18] sm:$0xf]
    %v1755 = vld [vmem:[%s13 + $0x1c] sm:$0xf]
    %v1756 = vld [vmem:[%s13 + $0x20] sm:$0xf]
    %v1757 = vld [vmem:[%s13 + $0x24] sm:$0xf]
    %v1758 = vld [vmem:[%s13 + $0x28] sm:$0xf]
    %v1759 = vld [vmem:[%s13 + $0x2c] sm:$0xf]
    %v1760 = vld [vmem:[%s13 + $0x30] sm:$0xf]
    %v1774 = vunpack.c.l.b16 %v1748
    %v1775 = vunpack.c.l.b16 %v1749
    %v1776 = vunpack.c.l.b16 %v1750
    %v1777 = vunpack.c.l.b16 %v1751
    %v1778 = vunpack.c.l.b16 %v1752
    %v1779 = vunpack.c.l.b16 %v1753
    %v1780 = vunpack.c.l.b16 %v1754
    %v1781 = vunpack.c.l.b16 %v1755
    %v1782 = vunpack.c.l.b16 %v1756
    %v1783 = vunpack.c.l.b16 %v1757
    %v1784 = vunpack.c.l.b16 %v1758
    %v1785 = vunpack.c.l.b16 %v1759
    %v1786 = vunpack.c.l.b16 %v1760
    %v1787 = vpack.c.b16 %v1775, %v1774
    %v1788 = vpack.c.b16 %v1777, %v1776
    %v1789 = vpack.c.b16 %v1779, %v1778
    %v1790 = vpack.c.b16 %v1781, %v1780
    %v1791 = vpack.c.b16 %v1783, %v1782
    %v1792 = vpack.c.b16 %v1785, %v1784
    %v1793 = vpack.c.b16 %v1786, %v1786
    %v1801 = vsel %vm1732, %v1747, 0
    %vm1803 = vcmask 1043456
    %v1805 = vsel %vm1803, %v1793, 0
    %1807 = vmatprep.subr.bf16.mxu0 0
    %1808 = vmatpush1.bf16.msra.mxu0 %v1787
    %1809 = vmatprep.subr.bf16.mxu0 0
    %1810 = vmatpush1.bf16.msra.mxu0 %v1788
    %1811 = vmatprep.subr.bf16.mxu0 0
    %1812 = vmatpush1.bf16.msra.mxu0 %v1789
    %1813 = vmatprep.subr.bf16.mxu0 0
    %1814 = vmatpush1.bf16.msra.mxu0 %v1790
    %1815 = vmatprep.subr.bf16.mxu0 0
    %1816 = vmatpush1.bf16.msra.mxu0 %v1791
    %1817 = vmatprep.subr.bf16.mxu0 0
    %1818 = vmatpush1.bf16.msra.mxu0 %v1792
    %1819 = vmatprep.subr.bf16.mxu0 0
    %1820 = vmatpush1.bf16.msra.mxu0 %v1805
    %1821 = vmatprep.subr.bf16.mxu0 0
    %1822 = vmatpush1.bf16.msra.mxu0 0
    %1823 = vmatprep.subr.bf16.mxu0 0
    %1824 = vmatpush1.bf16.msra.mxu0 0
    %1825 = vmatprep.subr.bf16.mxu0 0
    %1826 = vmatpush1.bf16.msra.mxu0 0
    %1827 = vmatprep.subr.bf16.mxu0 0
    %1828 = vmatpush1.bf16.msra.mxu0 0
    %1829 = vmatprep.subr.bf16.mxu0 0
    %1830 = vmatpush1.bf16.msra.mxu0 0
    %1831 = vmatprep.subr.bf16.mxu0 0
    %1832 = vmatpush1.bf16.msra.mxu0 0
    %1833 = vmatprep.subr.bf16.mxu0 0
    %1834 = vmatpush1.bf16.msra.mxu0 0
    %1835 = vmatprep.subr.bf16.mxu0 0
    %1836 = vmatpush1.bf16.msra.mxu0 0
    %1837 = vmatprep.subr.bf16.mxu0 0
    %1838 = vmatpush1.bf16.msra.mxu0 0
    %1839 = vmatprep.mubr.bf16.mxu0 0
    %1840 = vmatmul.mubr.bf16.gmra.mrb[0].mxu0 %v1801
    %v1841 = vpop.f32.mrb[0].mxu0
    %v1842 = vadd.f32 0.0, %v1841
    %v1843 = vpop.f32.mrb[0].mxu0
    %v1844 = vpop.f32.mrb[0].mxu0
    %v1845 = vpop.f32.mrb[0].mxu0
    %1846 = vdwg.mxu0
    %v1847 = vmul.f32 %v1842, 0.00295858
    %v1848 = vlaneseq
    %v1849 = vshrl.u32 %v1848, 7
    %v1850 = vsub.s32 0, %v1849
    %v1851 = vrot.slane %v1847, %v1850
    %v1852 = vsub.f32 %v1728, %v1851
    %v1853 = vsub.f32 %v1729, %v1851
    %v1854 = vsub.f32 %v1730, %v1851
    %v1855 = vsub.f32 %v1731, %v1851
    %v1856 = vmul.f32 %v1852, %v1852
    %v1857 = vmul.f32 %v1853, %v1853
    %v1858 = vmul.f32 %v1854, %v1854
    %v1859 = vmul.f32 %v1855, %v1855
    %v1860 = vsel %vm1732, %v1856, 0.0
    %v1861 = vsel %vm1732, %v1857, 0.0
    %v1862 = vadd.f32 %v1860, %v1861
    %v1863 = vsel %vm1732, %v1858, 0.0
    %v1864 = vadd.f32 %v1862, %v1863
    %v1865 = vsel %vm1738, %v1859, 0.0
    %v1866 = vadd.f32 %v1864, %v1865
    %v1867 = vrot.slane %v1866, 4
    %v1868 = vadd.f32 %v1866, %v1867
    %v1869 = vrot.slane %v1868, 2
    %v1870 = vadd.f32 %v1868, %v1869
    %v1871 = vrot.slane %v1870, 1
    %v1872 = vadd.f32 %v1870, %v1871
    %v1873 = vpack.c.bf16 %v1872, %v1872
    %v1875 = vsel %vm1732, %v1873, 0
    %1877 = vmatprep.subr.bf16.mxu0 0
    %1878 = vmatpush1.bf16.msra.mxu0 %v1787
    %1879 = vmatprep.subr.bf16.mxu0 0
    %1880 = vmatpush1.bf16.msra.mxu0 %v1788
    %1881 = vmatprep.subr.bf16.mxu0 0
    %1882 = vmatpush1.bf16.msra.mxu0 %v1789
    %1883 = vmatprep.subr.bf16.mxu0 0
    %1884 = vmatpush1.bf16.msra.mxu0 %v1790
    %1885 = vmatprep.subr.bf16.mxu0 0
    %1886 = vmatpush1.bf16.msra.mxu0 %v1791
    %1887 = vmatprep.subr.bf16.mxu0 0
    %1888 = vmatpush1.bf16.msra.mxu0 %v1792
    %1889 = vmatprep.subr.bf16.mxu0 0
    %1890 = vmatpush1.bf16.msra.mxu0 %v1805
    %1891 = vmatprep.subr.bf16.mxu0 0
    %1892 = vmatpush1.bf16.msra.mxu0 0
    %1893 = vmatprep.subr.bf16.mxu0 0
    %1894 = vmatpush1.bf16.msra.mxu0 0
    %1895 = vmatprep.subr.bf16.mxu0 0
    %1896 = vmatpush1.bf16.msra.mxu0 0
    %1897 = vmatprep.subr.bf16.mxu0 0
    %1898 = vmatpush1.bf16.msra.mxu0 0
    %1899 = vmatprep.subr.bf16.mxu0 0
    %1900 = vmatpush1.bf16.msra.mxu0 0
    %1901 = vmatprep.subr.bf16.mxu0 0
    %1902 = vmatpush1.bf16.msra.mxu0 0
    %1903 = vmatprep.subr.bf16.mxu0 0
    %1904 = vmatpush1.bf16.msra.mxu0 0
    %1905 = vmatprep.subr.bf16.mxu0 0
    %1906 = vmatpush1.bf16.msra.mxu0 0
    %1907 = vmatprep.subr.bf16.mxu0 0
    %1908 = vmatpush1.bf16.msra.mxu0 0
    %1909 = vmatprep.mubr.bf16.mxu0 0
    %1910 = vmatmul.mubr.bf16.gmra.mrb[0].mxu0 %v1875
    %v1911 = vpop.f32.mrb[0].mxu0
    %v1912 = vadd.f32 0.0, %v1911
    %v1913 = vpop.f32.mrb[0].mxu0
    %v1914 = vpop.f32.mrb[0].mxu0
    %v1915 = vpop.f32.mrb[0].mxu0
    %1916 = vdwg.mxu0
    %v1917 = vmul.f32 %v1912, 0.00295858
    %v1918 = vld [vmem:[%s14] sm:$0x1]
    %v1919 = vadd.f32 %v1917, 1e-05
    %v1920 = vrsqrt.pop %v1919
    %v1921 = vmul.f32 %v1918, %v1920
    %v1923 = vlaneseq
    %v1924 = vshrl.u32 %v1923, 7
    %v1925 = vsub.s32 0, %v1924
    %v1926 = vrot.slane %v1921, %v1925
    %v1928 = vmul.f32 %v1852, %v1926
    %v1929 = vmul.f32 %v1853, %v1926
    %v1930 = vmul.f32 %v1854, %v1926
    %v1931 = vmul.f32 %v1855, %v1926
    %v1932 = vld [vmem:[%s15] sm:$0x1]
    %v1934 = vlaneseq
    %v1935 = vshrl.u32 %v1934, 7
    %v1936 = vsub.s32 0, %v1935
    %v1937 = vrot.slane %v1932, %v1936
    %v1939 = vadd.f32 %v1928, %v1937
    %v1940 = vadd.f32 %v1929, %v1937
    %v1941 = vadd.f32 %v1930, %v1937
    %v1942 = vadd.f32 %v1931, %v1937
    %v1943 = vmax.f32 %v1939, 0.0
    %v1944 = vmax.f32 %v1940, 0.0
    %v1945 = vmax.f32 %v1941, 0.0
    %v1946 = vmax.f32 %v1942, 0.0
    %v1947 = vpack.c.bf16 %v1944, %v1943
    %v1948 = vpack.c.bf16 %v1946, %v1945
    %v1949 = vld [vmem:[#allocation15] sm:$0xf]
    %v1950 = vld [vmem:[#allocation15 + $0x4] sm:$0xf]
    %v1951 = vld [vmem:[#allocation15 + $0x8] sm:$0xf]
    %v1952 = vld [vmem:[#allocation15 + $0xc] sm:$0xf]
    %v1953 = vld [vmem:[#allocation15 + $0x10] sm:$0xf]
    %v1954 = vld [vmem:[#allocation15 + $0x14] sm:$0xf]
    %v1955 = vld [vmem:[#allocation15 + $0x18] sm:$0xf]
    %v1956 = vld [vmem:[#allocation15 + $0x1c] sm:$0xf]
    %v1957 = vld [vmem:[#allocation15 + $0x20] sm:$0xf]
    %v1958 = vld [vmem:[#allocation15 + $0x24] sm:$0xf]
    %v1959 = vld [vmem:[#allocation15 + $0x28] sm:$0xf]
    %v1960 = vld [vmem:[#allocation15 + $0x2c] sm:$0xf]
    %v1961 = vld [vmem:[#allocation15 + $0x30] sm:$0xf]
    %v1975 = vunpack.c.l.b16 %v1949
    %v1976 = vunpack.c.l.b16 %v1950
    %v1977 = vunpack.c.l.b16 %v1951
    %v1978 = vunpack.c.l.b16 %v1952
    %v1979 = vunpack.c.l.b16 %v1953
    %v1980 = vunpack.c.l.b16 %v1954
    %v1981 = vunpack.c.l.b16 %v1955
    %v1982 = vunpack.c.l.b16 %v1956
    %v1983 = vunpack.c.l.b16 %v1957
    %v1984 = vunpack.c.l.b16 %v1958
    %v1985 = vunpack.c.l.b16 %v1959
    %v1986 = vunpack.c.l.b16 %v1960
    %v1987 = vunpack.c.l.b16 %v1961
    %v1988 = vpack.c.b16 %v1976, %v1975
    %v1989 = vpack.c.b16 %v1978, %v1977
    %v1990 = vpack.c.b16 %v1980, %v1979
    %v1991 = vpack.c.b16 %v1982, %v1981
    %v1992 = vpack.c.b16 %v1984, %v1983
    %v1993 = vpack.c.b16 %v1986, %v1985
    %v1994 = vpack.c.b16 %v1987, %v1987
    %v2002 = vsel %vm1732, %v1947, 0
    %v2005 = vsel %vm1732, %v1948, 0
    %v2008 = vsel %vm1803, %v1994, 0
    %2010 = vmatprep.subr.bf16.mxu0 0
    %2011 = vmatpush1.bf16.msra.mxu0 %v1988
    %2012 = vmatprep.subr.bf16.mxu0 0
    %2013 = vmatpush1.bf16.msra.mxu0 %v1989
    %2014 = vmatprep.subr.bf16.mxu0 0
    %2015 = vmatpush1.bf16.msra.mxu0 %v1990
    %2016 = vmatprep.subr.bf16.mxu0 0
    %2017 = vmatpush1.bf16.msra.mxu0 %v1991
    %2018 = vmatprep.subr.bf16.mxu0 0
    %2019 = vmatpush1.bf16.msra.mxu0 %v1992
    %2020 = vmatprep.subr.bf16.mxu0 0
    %2021 = vmatpush1.bf16.msra.mxu0 %v1993
    %2022 = vmatprep.subr.bf16.mxu0 0
    %2023 = vmatpush1.bf16.msra.mxu0 %v2008
    %2024 = vmatprep.subr.bf16.mxu0 0
    %2025 = vmatpush1.bf16.msra.mxu0 0
    %2026 = vmatprep.subr.bf16.mxu0 0
    %2027 = vmatpush1.bf16.msra.mxu0 0
    %2028 = vmatprep.subr.bf16.mxu0 0
    %2029 = vmatpush1.bf16.msra.mxu0 0
    %2030 = vmatprep.subr.bf16.mxu0 0
    %2031 = vmatpush1.bf16.msra.mxu0 0
    %2032 = vmatprep.subr.bf16.mxu0 0
    %2033 = vmatpush1.bf16.msra.mxu0 0
    %2034 = vmatprep.subr.bf16.mxu0 0
    %2035 = vmatpush1.bf16.msra.mxu0 0
    %2036 = vmatprep.subr.bf16.mxu0 0
    %2037 = vmatpush1.bf16.msra.mxu0 0
    %2038 = vmatprep.subr.bf16.mxu0 0
    %2039 = vmatpush1.bf16.msra.mxu0 0
    %2040 = vmatprep.subr.bf16.mxu0 0
    %2041 = vmatpush1.bf16.msra.mxu0 0
    %2042 = vmatprep.mubr.bf16.mxu0 0
    %2043 = vmatmul.mubr.bf16.gmra.mrb[0].mxu0 %v2002
    %v2044 = vpop.f32.mrb[0].mxu0
    %v2045 = vadd.f32 0.0, %v2044
    %v2046 = vpop.f32.mrb[0].mxu0
    %v2047 = vpop.f32.mrb[0].mxu0
    %v2048 = vadd.f32 0.0, %v2047
    %v2049 = vpop.f32.mrb[0].mxu0
    %2050 = vmatprep.mubr.bf16.mxu0 0
    %2051 = vmatmul.mubr.bf16.gmra.mrb[0].mxu0 %v2005
    %v2052 = vpop.f32.mrb[0].mxu0
    %v2053 = vadd.f32 0.0, %v2052
    %v2054 = vpop.f32.mrb[0].mxu0
    %v2055 = vpop.f32.mrb[0].mxu0
    %v2056 = vadd.f32 0.0, %v2055
    %v2057 = vpop.f32.mrb[0].mxu0
    %2058 = vdwg.mxu0
    %v2059 = vpack.c.bf16 %v2048, %v2045
    %v2060 = vpack.c.bf16 %v2056, %v2053
    %v2061 = vld [vmem:[%s17] sm:$0xf]
    %v2062 = vld [vmem:[%s17 + $0x4] sm:$0xf]
    %v2063 = vld [vmem:[%s17 + $0x8] sm:$0xf]
    %v2064 = vld [vmem:[%s17 + $0xc] sm:$0xf]
    %v2065 = vld [vmem:[%s17 + $0x10] sm:$0xf]
    %v2066 = vld [vmem:[%s17 + $0x14] sm:$0xf]
    %v2067 = vld [vmem:[%s17 + $0x18] sm:$0xf]
    %s2068 = scalar_lea.vmem %s17, 28
    %v2069 = vld [vmem:[%s2068] sm:$0xf]
    %v2070 = vld [vmem:[%s2068 + $0x4] sm:$0xf]
    %v2071 = vld [vmem:[%s2068 + $0x8] sm:$0xf]
    %v2072 = vld [vmem:[%s2068 + $0xc] sm:$0xf]
    %v2073 = vld [vmem:[%s2068 + $0x10] sm:$0xf]
    %v2074 = vld [vmem:[%s2068 + $0x14] sm:$0xf]
    %v2075 = vld [vmem:[%s2068 + $0x18] sm:$0xf]
    %v2083 = vunpack.c.l.b16 %v2069
    %v2084 = vunpack.c.l.b16 %v2070
    %v2085 = vunpack.c.l.b16 %v2071
    %v2086 = vunpack.c.l.b16 %v2072
    %v2087 = vunpack.c.l.b16 %v2073
    %v2088 = vunpack.c.l.b16 %v2074
    %v2089 = vunpack.c.l.b16 %v2075
    %v2090 = vpack.c.b16 %v2084, %v2083
    %v2091 = vpack.c.b16 %v2086, %v2085
    %v2092 = vpack.c.b16 %v2088, %v2087
    %v2093 = vpack.c.b16 %v2089, %v2089
    %2096 = vrot.lane.b32.xlu0 %v2059, 100
    %v2097 = vpop.permute.xlu0 %2096
    %2098 = vrot.lane.b32.xlu0 %v2060, 100
    %v2099 = vpop.permute.xlu0 %2098
    %vm2101 = vcmask 211968
    %v2103 = vsel %vm2101, %v2090, 0
    %v2106 = vsel %vm2101, %v2091, 0
    %v2109 = vsel %vm2101, %v2092, 0
    %v2112 = vsel %vm2101, %v2093, 0
    %vm2114 = vcmask 1044480
    %v2116 = vsel %vm2114, %v2099, 0
    %2118 = vmatprep.subr.bf16.mxu0 0
    %2119 = vmatpush1.bf16.msra.mxu0 %v2097
    %2120 = vmatprep.subr.bf16.mxu0 0
    %2121 = vmatpush1.bf16.msra.mxu0 %v2116
    %2122 = vmatprep.subr.bf16.mxu0 0
    %2123 = vmatpush1.bf16.msra.mxu0 0
    %2124 = vmatprep.subr.bf16.mxu0 0
    %2125 = vmatpush1.bf16.msra.mxu0 0
    %2126 = vmatprep.subr.bf16.mxu0 0
    %2127 = vmatpush1.bf16.msra.mxu0 0
    %2128 = vmatprep.subr.bf16.mxu0 0
    %2129 = vmatpush1.bf16.msra.mxu0 0
    %2130 = vmatprep.subr.bf16.mxu0 0
    %2131 = vmatpush1.bf16.msra.mxu0 0
    %2132 = vmatprep.subr.bf16.mxu0 0
    %2133 = vmatpush1.bf16.msra.mxu0 0
    %2134 = vmatprep.subr.bf16.mxu0 0
    %2135 = vmatpush1.bf16.msra.mxu0 0
    %2136 = vmatprep.subr.bf16.mxu0 0
    %2137 = vmatpush1.bf16.msra.mxu0 0
    %2138 = vmatprep.subr.bf16.mxu0 0
    %2139 = vmatpush1.bf16.msra.mxu0 0
    %2140 = vmatprep.subr.bf16.mxu0 0
    %2141 = vmatpush1.bf16.msra.mxu0 0
    %2142 = vmatprep.subr.bf16.mxu0 0
    %2143 = vmatpush1.bf16.msra.mxu0 0
    %2144 = vmatprep.subr.bf16.mxu0 0
    %2145 = vmatpush1.bf16.msra.mxu0 0
    %2146 = vmatprep.subr.bf16.mxu0 0
    %2147 = vmatpush1.bf16.msra.mxu0 0
    %2148 = vmatprep.subr.bf16.mxu0 0
    %2149 = vmatpush1.bf16.msra.mxu0 0
    %2150 = vmatprep.mubr.bf16.mxu0 0
    %2151 = vmatmul.mubr.bf16.gmra.mrb[0].mxu0 %v2103
    %v2152 = vpop.f32.mrb[0].mxu0
    %v2153 = vadd.f32 0.0, %v2152
    %v2154 = vpop.f32.mrb[0].mxu0
    %v2155 = vpop.f32.mrb[0].mxu0
    %v2156 = vadd.f32 0.0, %v2155
    %v2157 = vpop.f32.mrb[0].mxu0
    %2158 = vmatprep.mubr.bf16.mxu0 0
    %2159 = vmatmul.mubr.bf16.gmra.mrb[0].mxu0 %v2106
    %v2160 = vpop.f32.mrb[0].mxu0
    %v2161 = vadd.f32 0.0, %v2160
    %v2162 = vpop.f32.mrb[0].mxu0
    %v2163 = vpop.f32.mrb[0].mxu0
    %v2164 = vadd.f32 0.0, %v2163
    %v2165 = vpop.f32.mrb[0].mxu0
    %2166 = vmatprep.mubr.bf16.mxu0 0
    %2167 = vmatmul.mubr.bf16.gmra.mrb[0].mxu0 %v2109
    %v2168 = vpop.f32.mrb[0].mxu0
    %v2169 = vadd.f32 0.0, %v2168
    %v2170 = vpop.f32.mrb[0].mxu0
    %v2171 = vpop.f32.mrb[0].mxu0
    %v2172 = vadd.f32 0.0, %v2171
    %v2173 = vpop.f32.mrb[0].mxu0
    %2174 = vmatprep.mubr.bf16.mxu0 0
    %2175 = vmatmul.mubr.bf16.gmra.mrb[0].mxu0 %v2112
    %v2176 = vpop.f32.mrb[0].mxu0
    %v2177 = vadd.f32 0.0, %v2176
    %v2178 = vpop.f32.mrb[0].mxu0
    %v2179 = vpop.f32.mrb[0].mxu0
    %v2180 = vpop.f32.mrb[0].mxu0
    %2181 = vdwg.mxu0
    %v2189 = vunpack.c.l.b16 %v2061
    %v2190 = vunpack.c.l.b16 %v2062
    %v2191 = vunpack.c.l.b16 %v2063
    %v2192 = vunpack.c.l.b16 %v2064
    %v2193 = vunpack.c.l.b16 %v2065
    %v2194 = vunpack.c.l.b16 %v2066
    %v2195 = vunpack.c.l.b16 %v2067
    %v2196 = vpack.c.b16 %v2190, %v2189
    %v2197 = vpack.c.b16 %v2192, %v2191
    %v2198 = vpack.c.b16 %v2194, %v2193
    %v2199 = vpack.c.b16 %v2195, %v2195
    %v2201 = vsel %vm2101, %v2196, 0
    %v2204 = vsel %vm2101, %v2197, 0
    %v2207 = vsel %vm2101, %v2198, 0
    %v2210 = vsel %vm2101, %v2199, 0
    %v2213 = vsel %vm2114, %v2060, 0
    %2215 = vmatprep.subr.bf16.mxu0 0
    %2216 = vmatpush1.bf16.msra.mxu0 %v2059
    %2217 = vmatprep.subr.bf16.mxu0 0
    %2218 = vmatpush1.bf16.msra.mxu0 %v2213
    %2219 = vmatprep.subr.bf16.mxu0 0
    %2220 = vmatpush1.bf16.msra.mxu0 0
    %2221 = vmatprep.subr.bf16.mxu0 0
    %2222 = vmatpush1.bf16.msra.mxu0 0
    %2223 = vmatprep.subr.bf16.mxu0 0
    %2224 = vmatpush1.bf16.msra.mxu0 0
    %2225 = vmatprep.subr.bf16.mxu0 0
    %2226 = vmatpush1.bf16.msra.mxu0 0
    %2227 = vmatprep.subr.bf16.mxu0 0
    %2228 = vmatpush1.bf16.msra.mxu0 0
    %2229 = vmatprep.subr.bf16.mxu0 0
    %2230 = vmatpush1.bf16.msra.mxu0 0
    %2231 = vmatprep.subr.bf16.mxu0 0
    %2232 = vmatpush1.bf16.msra.mxu0 0
    %2233 = vmatprep.subr.bf16.mxu0 0
    %2234 = vmatpush1.bf16.msra.mxu0 0
    %2235 = vmatprep.subr.bf16.mxu0 0
    %2236 = vmatpush1.bf16.msra.mxu0 0
    %2237 = vmatprep.subr.bf16.mxu0 0
    %2238 = vmatpush1.bf16.msra.mxu0 0
    %2239 = vmatprep.subr.bf16.mxu0 0
    %2240 = vmatpush1.bf16.msra.mxu0 0
    %2241 = vmatprep.subr.bf16.mxu0 0
    %2242 = vmatpush1.bf16.msra.mxu0 0
    %2243 = vmatprep.subr.bf16.mxu0 0
    %2244 = vmatpush1.bf16.msra.mxu0 0
    %2245 = vmatprep.subr.bf16.mxu0 0
    %2246 = vmatpush1.bf16.msra.mxu0 0
    %2247 = vmatprep.mubr.bf16.mxu0 0
    %2248 = vmatmul.mubr.bf16.gmra.mrb[0].mxu0 %v2201
    %v2249 = vpop.f32.mrb[0].mxu0
    %v2250 = vadd.f32 %v2153, %v2249
    %v2251 = vpop.f32.mrb[0].mxu0
    %v2252 = vpop.f32.mrb[0].mxu0
    %v2253 = vadd.f32 %v2156, %v2252
    %v2254 = vpop.f32.mrb[0].mxu0
    %2255 = vmatprep.mubr.bf16.mxu0 0
    %2256 = vmatmul.mubr.bf16.gmra.mrb[0].mxu0 %v2204
    %v2257 = vpop.f32.mrb[0].mxu0
    %v2258 = vadd.f32 %v2161, %v2257
    %v2259 = vpop.f32.mrb[0].mxu0
    %v2260 = vpop.f32.mrb[0].mxu0
    %v2261 = vadd.f32 %v2164, %v2260
    %v2262 = vpop.f32.mrb[0].mxu0
    %2263 = vmatprep.mubr.bf16.mxu0 0
    %2264 = vmatmul.mubr.bf16.gmra.mrb[0].mxu0 %v2207
    %v2265 = vpop.f32.mrb[0].mxu0
    %v2266 = vadd.f32 %v2169, %v2265
    %v2267 = vpop.f32.mrb[0].mxu0
    %v2268 = vpop.f32.mrb[0].mxu0
    %v2269 = vadd.f32 %v2172, %v2268
    %v2270 = vpop.f32.mrb[0].mxu0
    %2271 = vmatprep.mubr.bf16.mxu0 0
    %2272 = vmatmul.mubr.bf16.gmra.mrb[0].mxu0 %v2210
    %v2273 = vpop.f32.mrb[0].mxu0
    %v2274 = vadd.f32 %v2177, %v2273
    %v2275 = vpop.f32.mrb[0].mxu0
    %v2276 = vpop.f32.mrb[0].mxu0
    %v2277 = vpop.f32.mrb[0].mxu0
    %2278 = vdwg.mxu0
    %s2279 = scalar_lea.vmem %s17, 56
    %v2280 = vld [vmem:[%s2279] sm:$0xf]
    %v2281 = vld [vmem:[%s2279 + $0x4] sm:$0xf]
    %v2282 = vld [vmem:[%s2279 + $0x8] sm:$0xf]
    %v2283 = vld [vmem:[%s2279 + $0xc] sm:$0xf]
    %v2284 = vld [vmem:[%s2279 + $0x10] sm:$0xf]
    %v2285 = vld [vmem:[%s2279 + $0x14] sm:$0xf]
    %v2286 = vld [vmem:[%s2279 + $0x18] sm:$0xf]
    %v2294 = vunpack.c.l.b16 %v2280
    %v2295 = vunpack.c.l.b16 %v2281
    %v2296 = vunpack.c.l.b16 %v2282
    %v2297 = vunpack.c.l.b16 %v2283
    %v2298 = vunpack.c.l.b16 %v2284
    %v2299 = vunpack.c.l.b16 %v2285
    %v2300 = vunpack.c.l.b16 %v2286
    %v2301 = vpack.c.b16 %v2295, %v2294
    %v2302 = vpack.c.b16 %v2297, %v2296
    %v2303 = vpack.c.b16 %v2299, %v2298
    %v2304 = vpack.c.b16 %v2300, %v2300
    %2305 = vrot.lane.b32.xlu0 %v2059, 72
    %v2306 = vpop.permute.xlu0 %2305
    %2307 = vrot.lane.b32.xlu0 %v2060, 72
    %v2308 = vpop.permute.xlu0 %2307
    %v2311 = vsel %vm2101, %v2301, 0
    %v2314 = vsel %vm2101, %v2302, 0
    %v2317 = vsel %vm2101, %v2303, 0
    %v2320 = vsel %vm2101, %v2304, 0
    %v2323 = vsel %vm2114, %v2308, 0
    %2325 = vmatprep.subr.bf16.mxu0 0
    %2326 = vmatpush1.bf16.msra.mxu0 %v2306
    %2327 = vmatprep.subr.bf16.mxu0 0
    %2328 = vmatpush1.bf16.msra.mxu0 %v2323
    %2329 = vmatprep.subr.bf16.mxu0 0
    %2330 = vmatpush1.bf16.msra.mxu0 0
    %2331 = vmatprep.subr.bf16.mxu0 0
    %2332 = vmatpush1.bf16.msra.mxu0 0
    %2333 = vmatprep.subr.bf16.mxu0 0
    %2334 = vmatpush1.bf16.msra.mxu0 0
    %2335 = vmatprep.subr.bf16.mxu0 0
    %2336 = vmatpush1.bf16.msra.mxu0 0
    %2337 = vmatprep.subr.bf16.mxu0 0
    %2338 = vmatpush1.bf16.msra.mxu0 0
    %2339 = vmatprep.subr.bf16.mxu0 0
    %2340 = vmatpush1.bf16.msra.mxu0 0
    %2341 = vmatprep.subr.bf16.mxu0 0
    %2342 = vmatpush1.bf16.msra.mxu0 0
    %2343 = vmatprep.subr.bf16.mxu0 0
    %2344 = vmatpush1.bf16.msra.mxu0 0
    %2345 = vmatprep.subr.bf16.mxu0 0
    %2346 = vmatpush1.bf16.msra.mxu0 0
    %2347 = vmatprep.subr.bf16.mxu0 0
    %2348 = vmatpush1.bf16.msra.mxu0 0
    %2349 = vmatprep.subr.bf16.mxu0 0
    %2350 = vmatpush1.bf16.msra.mxu0 0
    %2351 = vmatprep.subr.bf16.mxu0 0
    %2352 = vmatpush1.bf16.msra.mxu0 0
    %2353 = vmatprep.subr.bf16.mxu0 0
    %2354 = vmatpush1.bf16.msra.mxu0 0
    %2355 = vmatprep.subr.bf16.mxu0 0
    %2356 = vmatpush1.bf16.msra.mxu0 0
    %2357 = vmatprep.mubr.bf16.mxu0 0
    %2358 = vmatmul.mubr.bf16.gmra.mrb[0].mxu0 %v2311
    %v2359 = vpop.f32.mrb[0].mxu0
    %v2360 = vadd.f32 0.0, %v2359
    %v2361 = vpop.f32.mrb[0].mxu0
    %v2362 = vpop.f32.mrb[0].mxu0
    %v2363 = vadd.f32 0.0, %v2362
    %v2364 = vpop.f32.mrb[0].mxu0
    %2365 = vmatprep.mubr.bf16.mxu0 0
    %2366 = vmatmul.mubr.bf16.gmra.mrb[0].mxu0 %v2314
    %v2367 = vpop.f32.mrb[0].mxu0
    %v2368 = vadd.f32 0.0, %v2367
    %v2369 = vpop.f32.mrb[0].mxu0
    %v2370 = vpop.f32.mrb[0].mxu0
    %v2371 = vadd.f32 0.0, %v2370
    %v2372 = vpop.f32.mrb[0].mxu0
    %2373 = vmatprep.mubr.bf16.mxu0 0
    %2374 = vmatmul.mubr.bf16.gmra.mrb[0].mxu0 %v2317
    %v2375 = vpop.f32.mrb[0].mxu0
    %v2376 = vadd.f32 0.0, %v2375
    %v2377 = vpop.f32.mrb[0].mxu0
    %v2378 = vpop.f32.mrb[0].mxu0
    %v2379 = vadd.f32 0.0, %v2378
    %v2380 = vpop.f32.mrb[0].mxu0
    %2381 = vmatprep.mubr.bf16.mxu0 0
    %2382 = vmatmul.mubr.bf16.gmra.mrb[0].mxu0 %v2320
    %v2383 = vpop.f32.mrb[0].mxu0
    %v2384 = vadd.f32 0.0, %v2383
    %v2385 = vpop.f32.mrb[0].mxu0
    %v2386 = vpop.f32.mrb[0].mxu0
    %v2387 = vpop.f32.mrb[0].mxu0
    %2388 = vdwg.mxu0
    %v2389 = vadd.f32 %v2250, %v2360
    %v2390 = vadd.f32 %v2253, %v2363
    %v2391 = vadd.f32 %v2258, %v2368
    %v2392 = vadd.f32 %v2261, %v2371
    %v2393 = vadd.f32 %v2266, %v2376
    %v2394 = vadd.f32 %v2269, %v2379
    %v2395 = vadd.f32 %v2274, %v2384
    %s2396 = scalar_lea.vmem %s17, 84
    %v2397 = vld [vmem:[%s2396] sm:$0xf]
    %v2398 = vld [vmem:[%s2396 + $0x4] sm:$0xf]
    %v2399 = vld [vmem:[%s2396 + $0x8] sm:$0xf]
    %v2400 = vld [vmem:[%s2396 + $0xc] sm:$0xf]
    %v2401 = vld [vmem:[%s2396 + $0x10] sm:$0xf]
    %v2402 = vld [vmem:[%s2396 + $0x14] sm:$0xf]
    %v2403 = vld [vmem:[%s2396 + $0x18] sm:$0xf]
    %v2411 = vunpack.c.l.b16 %v2397
    %v2412 = vunpack.c.l.b16 %v2398
    %v2413 = vunpack.c.l.b16 %v2399
    %v2414 = vunpack.c.l.b16 %v2400
    %v2415 = vunpack.c.l.b16 %v2401
    %v2416 = vunpack.c.l.b16 %v2402
    %v2417 = vunpack.c.l.b16 %v2403
    %v2418 = vpack.c.b16 %v2412, %v2411
    %v2419 = vpack.c.b16 %v2414, %v2413
    %v2420 = vpack.c.b16 %v2416, %v2415
    %v2421 = vpack.c.b16 %v2417, %v2417
    %2422 = vrot.lane.b32.xlu0 %v2059, 44
    %v2423 = vpop.permute.xlu0 %2422
    %2424 = vrot.lane.b32.xlu0 %v2060, 44
    %v2425 = vpop.permute.xlu0 %2424
    %v2428 = vsel %vm2101, %v2418, 0
    %v2431 = vsel %vm2101, %v2419, 0
    %v2434 = vsel %vm2101, %v2420, 0
    %v2437 = vsel %vm2101, %v2421, 0
    %v2440 = vsel %vm2114, %v2425, 0
    %2442 = vmatprep.subr.bf16.mxu0 0
    %2443 = vmatpush1.bf16.msra.mxu0 %v2423
    %2444 = vmatprep.subr.bf16.mxu0 0
    %2445 = vmatpush1.bf16.msra.mxu0 %v2440
    %2446 = vmatprep.subr.bf16.mxu0 0
    %2447 = vmatpush1.bf16.msra.mxu0 0
    %2448 = vmatprep.subr.bf16.mxu0 0
    %2449 = vmatpush1.bf16.msra.mxu0 0
    %2450 = vmatprep.subr.bf16.mxu0 0
    %2451 = vmatpush1.bf16.msra.mxu0 0
    %2452 = vmatprep.subr.bf16.mxu0 0
    %2453 = vmatpush1.bf16.msra.mxu0 0
    %2454 = vmatprep.subr.bf16.mxu0 0
    %2455 = vmatpush1.bf16.msra.mxu0 0
    %2456 = vmatprep.subr.bf16.mxu0 0
    %2457 = vmatpush1.bf16.msra.mxu0 0
    %2458 = vmatprep.subr.bf16.mxu0 0
    %2459 = vmatpush1.bf16.msra.mxu0 0
    %2460 = vmatprep.subr.bf16.mxu0 0
    %2461 = vmatpush1.bf16.msra.mxu0 0
    %2462 = vmatprep.subr.bf16.mxu0 0
    %2463 = vmatpush1.bf16.msra.mxu0 0
    %2464 = vmatprep.subr.bf16.mxu0 0
    %2465 = vmatpush1.bf16.msra.mxu0 0
    %2466 = vmatprep.subr.bf16.mxu0 0
    %2467 = vmatpush1.bf16.msra.mxu0 0
    %2468 = vmatprep.subr.bf16.mxu0 0
    %2469 = vmatpush1.bf16.msra.mxu0 0
    %2470 = vmatprep.subr.bf16.mxu0 0
    %2471 = vmatpush1.bf16.msra.mxu0 0
    %2472 = vmatprep.subr.bf16.mxu0 0
    %2473 = vmatpush1.bf16.msra.mxu0 0
    %2474 = vmatprep.mubr.bf16.mxu0 0
    %2475 = vmatmul.mubr.bf16.gmra.mrb[0].mxu0 %v2428
    %v2476 = vpop.f32.mrb[0].mxu0
    %v2477 = vadd.f32 0.0, %v2476
    %v2478 = vpop.f32.mrb[0].mxu0
    %v2479 = vpop.f32.mrb[0].mxu0
    %v2480 = vadd.f32 0.0, %v2479
    %v2481 = vpop.f32.mrb[0].mxu0
    %2482 = vmatprep.mubr.bf16.mxu0 0
    %2483 = vmatmul.mubr.bf16.gmra.mrb[0].mxu0 %v2431
    %v2484 = vpop.f32.mrb[0].mxu0
    %v2485 = vadd.f32 0.0, %v2484
    %v2486 = vpop.f32.mrb[0].mxu0
    %v2487 = vpop.f32.mrb[0].mxu0
    %v2488 = vadd.f32 0.0, %v2487
    %v2489 = vpop.f32.mrb[0].mxu0
    %2490 = vmatprep.mubr.bf16.mxu0 0
    %2491 = vmatmul.mubr.bf16.gmra.mrb[0].mxu0 %v2434
    %v2492 = vpop.f32.mrb[0].mxu0
    %v2493 = vadd.f32 0.0, %v2492
    %v2494 = vpop.f32.mrb[0].mxu0
    %v2495 = vpop.f32.mrb[0].mxu0
    %v2496 = vadd.f32 0.0, %v2495
    %v2497 = vpop.f32.mrb[0].mxu0
    %2498 = vmatprep.mubr.bf16.mxu0 0
    %2499 = vmatmul.mubr.bf16.gmra.mrb[0].mxu0 %v2437
    %v2500 = vpop.f32.mrb[0].mxu0
    %v2501 = vadd.f32 0.0, %v2500
    %v2502 = vpop.f32.mrb[0].mxu0
    %v2503 = vpop.f32.mrb[0].mxu0
    %v2504 = vpop.f32.mrb[0].mxu0
    %2505 = vdwg.mxu0
    %v2506 = vadd.f32 %v2389, %v2477
    %v2507 = vadd.f32 %v2390, %v2480
    %v2508 = vadd.f32 %v2391, %v2485
    %v2509 = vadd.f32 %v2392, %v2488
    %v2510 = vadd.f32 %v2393, %v2493
    %v2511 = vadd.f32 %v2394, %v2496
    %v2512 = vadd.f32 %v2395, %v2501
    %v2513 = vld [vmem:[%s18] sm:$0x1]
    %v2515 = vlaneseq
    %v2516 = vshrl.u32 %v2515, 7
    %v2517 = vsub.s32 0, %v2516
    %v2518 = vrot.slane %v2513, %v2517
    %v2520 = vadd.f32 %v2506, %v2518
    %v2521 = vadd.f32 %v2507, %v2518
    %v2522 = vadd.f32 %v2508, %v2518
    %v2523 = vadd.f32 %v2509, %v2518
    %v2524 = vadd.f32 %v2510, %v2518
    %v2525 = vadd.f32 %v2511, %v2518
    %v2526 = vadd.f32 %v2512, %v2518
    %v2527 = vtanh.pop %v2520
    %v2528 = vtanh.pop %v2521
    %v2529 = vtanh.pop %v2522
    %v2530 = vtanh.pop %v2523
    %v2531 = vtanh.pop %v2524
    %v2532 = vtanh.pop %v2525
    %v2533 = vtanh.pop %v2526
    %vm2534 = vcmask 228352
    %2535 = vst.msk [vmem:[%s19] sm:$0xff] %vm2534, %v2527
    %2536 = vst.msk [vmem:[%s19 + $0x8] sm:$0xff] %vm2534, %v2528
    %2537 = vst.msk [vmem:[%s19 + $0x10] sm:$0xff] %vm2534, %v2529
    %2538 = vst.msk [vmem:[%s19 + $0x18] sm:$0xff] %vm2534, %v2530
    %2539 = vst.msk [vmem:[%s19 + $0x20] sm:$0xff] %vm2534, %v2531
    %2540 = vst.msk [vmem:[%s19 + $0x28] sm:$0xff] %vm2534, %v2532
    %2541 = vst.msk [vmem:[%s19 + $0x30] sm:$0xff] %vm2534, %v2533
    // Predicated region
    $region114: #{tpu_custom_call.1} parent=1 // pred_check
      _
    $region115: #{tpu_custom_call.1} parent=1 // pred_check_branch
      %2543 = sbr.rel (0) target = $region117
    $region116: #{tpu_custom_call.1} parent=1 // pred_region
      _
    $region117: #{tpu_custom_call.1} parent=1 // pred_fallthru
      _
    // Predicated region
    $region118: #{tpu_custom_call.1} parent=1 // pred_check
      _
    $region119: #{tpu_custom_call.1} parent=1 // pred_check_branch
      %2545 = sbr.rel (0) target = $region121
    $region120: #{tpu_custom_call.1} parent=1 // pred_region
      _
    $region121: #{tpu_custom_call.1} parent=1 // pred_fallthru
      _
    %2546 = vsyncpa [#allocation3], 1
    %2547 = vsyncpa [#allocation5], 1
    %2548 = vsyncpa [#allocation8], 1
    %2549 = vsyncpa [#allocation11], 1
    %2550 = vsyncpa [#allocation14], 1

</llo_original>
